<compile_context>
chip_gen: v5e
topology: v5e:2x2
jax: 0.10.0
libtpu: 0.0.40
codegen_flags: <defaults>
</compile_context>

<pallas_src>
import functools

import numpy as np
import jax
import jax.numpy as jnp
from jax import lax
from jax.experimental import pallas as pl
from jax.experimental.pallas import tpu as pltpu

# TODO(synk): PRIMITIVES / OPS are imported (not defined) in the provided
# source; a deterministic DARTS-style 6-primitive linear set is substituted.
PRIMITIVES = ["none", "skip_connect", "conv_3x3", "conv_1x1",
              "avg_pool_3x3", "max_pool_3x3"]
NUM_PRIM = len(PRIMITIVES)

LANE = 128
SUBLANE = 8
HALO = 128          # zero halo (lanes) so tap slices stay in bounds; needs >= W+3


# ------------------------------ Pallas kernel ------------------------------

def cell_kernel(mask_ref, w_ref, s0_ref, s1_ref, o_ref, pat_ref,
                *, steps, cpad, wp, width):
    """Whole-cell kernel for one block of `bb` lane-concatenated images.

    Every state tensor is (cpad, width) f32 with width = bb * PGP; each image
    owns one 128-aligned PGP-wide lane slab holding its flattened zero-padded
    (H+2)x(W+2) grid.  A 3x3 tap is a static lane-offset slice of the state
    value wrapped in an aligned 128-lane zero halo.

    mask_ref : (9, width) f32; row k = 1.0 where tap k of that output lane is
               a real image pixel (row 4 == the interior mask itself).
    w_ref    : (cpad, E*10*cpad) bf16 fused per-edge weights; blocks 0..8 are
               the folded conv/skip/1x1/avg taps, block 9 is alpha_maxpool * I.
    pat_ref  : ((steps+1)*10*cpad, width) bf16 scratch holding, per DAG state,
               its 9 shifted taps + its 3x3 max ("pseudo tap").
    """
    f32 = jnp.float32
    offsets = [dy * wp + dx for dy in (-1, 0, 1) for dx in (-1, 0, 1)]
    kb = 10 * cpad                                    # rows per state in pat_ref

    maskf = mask_ref[...]                             # (9, width) f32
    tap_ok = [maskf[k:k + 1, :] > 0.5 for k in range(9)]   # (1, width) each
    interior = tap_ok[4]                              # centre tap == interior
    zhalo = jnp.zeros((cpad, HALO), f32)

    def emit_patches(hp, j):
        """hp: (cpad, width) f32 state (zero outside interior pixels).
        Writes its 10-block patch slab into pat_ref rows [j*kb, (j+1)*kb)."""
        hpad = jnp.concatenate([zhalo, hp, zhalo], axis=1)     # aligned concat
        taps = [hp if o == 0 else hpad[:, HALO + o:HALO + o + width]
                for o in offsets]
        mx = taps[4]                                   # centre always valid
        for k in range(9):
            if k != 4:
                mx = jnp.maximum(mx, jnp.where(tap_ok[k], taps[k], -jnp.inf))
        slab = jnp.concatenate(taps + [mx], axis=0)    # (10*cpad, width) f32
        pat_ref[j * kb:(j + 1) * kb, :] = slab.astype(jnp.bfloat16)

    w_all = w_ref[...]                                 # (cpad, E*kb) bf16
    states = [s0_ref[0], s1_ref[0]]                    # (cpad, width) f32
    emit_patches(states[0], 0)
    emit_patches(states[1], 1)

    new_states = []
    offset = 0
    for i in range(steps):                             # python-unrolled DAG
        nin = len(states)
        wstep = w_all[:, offset * kb:(offset + nin) * kb]      # (cpad, nin*kb)
        # ONE MXU matmul evaluates every edge feeding step i (conv taps, skip,
        # 1x1, avg-pool and alpha-weighted max-pool are all folded into wstep).
        acc = jnp.dot(wstep, pat_ref[0:nin * kb, :],
                      preferred_element_type=f32)              # (cpad, width)
        offset += nin
        new_states.append(acc)
        if i < steps - 1:                              # state feeds later edges
            st = jnp.where(interior, acc, 0.0)         # keep pad cells at zero
            states.append(st)
            emit_patches(st, len(states) - 1)

    # TODO(synk): torch.sum(states[-steps:], dim=1) is read as the elementwise
    # sum of the last `steps` states (stack along a new dim-1, reduce it).
    out = new_states[0]
    for s in new_states[1:]:
        out = out + s
    o_ref[0] = out


# --------------------------------- wrapper ---------------------------------

def _effective_weight(alpha, w3, w1, cpad):
    """Fold none/skip/conv3x3/conv1x1/avg_pool AND alpha_max*maxpool into one
    (cpad, 10*cpad) block: MixedOp(x) = Wblk @ [taps_0..8(x); maxpool3x3(x)]."""
    c = w1.shape[0]
    eye = jnp.eye(c, dtype=jnp.float32)
    w3r = w3.reshape(9, c, c)                                  # (tap, ci, co)
    wk = alpha[2] * w3r + (alpha[4] / 9.0) * eye[None, :, :]   # conv3 + avg
    wk = wk.at[4].add(alpha[1] * eye + alpha[3] * w1)          # + skip + 1x1
    w10 = jnp.concatenate([wk, (alpha[5] * eye)[None]], axis=0)  # + maxpool tap
    w10 = jnp.transpose(w10, (2, 0, 1))                        # (co, tap, ci)
    w10 = jnp.pad(w10, ((0, cpad - c), (0, 0), (0, cpad - c)))
    return w10.reshape(cpad, 10 * cpad)


class CellPallas:
    """Pallas port of Cell(steps, multiplier, emb_dim, C_prev_prev, C_prev, C)."""

    def __init__(self, steps, multiplier, emb_dim, c_prev_prev, c_prev, c, key):
        self._steps = steps
        self._multiplier = multiplier   # TODO(synk): unused by forward (as in original).
        self._emb_dim = emb_dim         # TODO(synk): only used by the unspecified OPS ctors.
        self._c = c
        self.num_edges = sum(2 + i for i in range(steps))
        self.params = []
        for _ in range(self.num_edges):
            key, k3, k1 = jax.random.split(key, 3)
            w3 = 0.1 * jax.random.normal(k3, (9 * c, c), jnp.float32)
            w1 = 0.1 * jax.random.normal(k1, (c, c), jnp.float32)
            self.params.append((w3, w1))

    def __call__(self, s0_nchw, s1_nchw, weights, block_batch=None):
        n, c, h, w = s0_nchw.shape
        assert c == self._c and s1_nchw.shape == s0_nchw.shape
        assert w + 3 <= HALO
        steps = self._steps
        cpad = ((c + SUBLANE - 1) // SUBLANE) * SUBLANE        # full-sublane channels
        pg = (h + 2) * (w + 2)
        pgp = pl.cdiv(pg, LANE) * LANE                         # lane-aligned image slab
        kb = 10 * cpad

        # ---- block batch: lane-concatenate bb images per grid block.  Keep 2
        # grid blocks when N permits (v7x megacore) and cap bb by a VMEM budget.
        bytes_per_img = pgp * (cpad * 4 * (steps + 10)         # f32 states / IO / temps
                               + kb * 2 * (steps + 1)          # bf16 patch scratch
                               + kb * 4                        # slab assembly temp
                               + 9 * 4)                        # tap masks
        cap = max(1, (12 << 20) // bytes_per_img)
        if block_batch is None:
            target = max(1, n // 2)
            bb = 1
            for d in range(1, n + 1):
                if n % d == 0 and d <= target and d <= cap:
                    bb = d
        else:
            bb = block_batch
        assert n % bb == 0
        nblocks = n // bb
        width = bb * pgp

        def to_blocks(x):        # (N,C,H,W) -> (nblocks, cpad, bb*PGP)
            xp = jnp.pad(x.astype(jnp.float32),
                         ((0, 0), (0, cpad - c), (1, 1), (1, 1)))
            xf = jnp.pad(xp.reshape(n, cpad, pg),
                         ((0, 0), (0, 0), (0, pgp - pg)))
            return (xf.reshape(nblocks, bb, cpad, pgp)
                      .transpose(0, 2, 1, 3).reshape(nblocks, cpad, width))

        s0b = to_blocks(s0_nchw)
        s1b = to_blocks(s1_nchw)

        # ---- per-tap validity masks, shared across channels & images:
        # mask9[k, p] = 1 iff tap k of output lane p lands on a real image pixel.
        wp = w + 2
        inter = np.zeros((h + 2, w + 2), np.float32)
        inter[1:h + 1, 1:w + 1] = 1.0
        flat = np.zeros(pgp, np.float32)
        flat[:pg] = inter.reshape(-1)
        offs = [dy * wp + dx for dy in (-1, 0, 1) for dx in (-1, 0, 1)]
        mask9 = np.zeros((9, pgp), np.float32)
        for k, o in enumerate(offs):
            if o >= 0:
                mask9[k, :pgp - o] = flat[o:]
            else:
                mask9[k, -o:] = flat[:pgp + o]
        mask9 = jnp.asarray(np.tile(mask9, (1, bb)))           # (9, width)

        # ---- fused per-edge weights: bf16 MXU operands, f32 accumulation.
        weff = jnp.concatenate(
            [_effective_weight(weights[e], *self.params[e], cpad)
             for e in range(self.num_edges)], axis=1).astype(jnp.bfloat16)

        kernel = functools.partial(cell_kernel, steps=steps, cpad=cpad,
                                   wp=wp, width=width)
        out = pl.pallas_call(
            kernel,
            out_shape=jax.ShapeDtypeStruct((nblocks, cpad, width), jnp.float32),
            grid=(nblocks,),
            in_specs=[
                pl.BlockSpec((9, width), lambda i: (0, 0)),               # tap masks
                pl.BlockSpec((cpad, self.num_edges * kb), lambda i: (0, 0)),
                pl.BlockSpec((1, cpad, width), lambda i: (i, 0, 0)),      # s0 block
                pl.BlockSpec((1, cpad, width), lambda i: (i, 0, 0)),      # s1 block
            ],
            out_specs=pl.BlockSpec((1, cpad, width), lambda i: (i, 0, 0)),
            scratch_shapes=[pltpu.VMEM(((steps + 1) * kb, width), jnp.bfloat16)],
            compiler_params=pltpu.CompilerParams(
                dimension_semantics=("parallel",)),
        )(mask9, weff, s0b, s1b)

        # (nblocks, cpad, bb*PGP) -> NCHW interior
        out = (out.reshape(nblocks, cpad, bb, pgp)
                  .transpose(0, 2, 1, 3).reshape(n, cpad, pgp))
        return out[:, :c, :pg].reshape(n, c, h + 2, w + 2)[:, :, 1:-1, 1:-1]


# ---------------------------- pure-JAX reference ----------------------------

def _ref_mixed_op(x, alphas, w3, w1):
    _, _, _, c = x.shape
    dn = ("NHWC", "HWIO", "NHWC")
    hp = lax.Precision.HIGHEST
    conv3 = lax.conv_general_dilated(x, w3.reshape(3, 3, c, c), (1, 1), "SAME",
                                     dimension_numbers=dn, precision=hp)
    conv1 = lax.conv_general_dilated(x, w1.reshape(1, 1, c, c), (1, 1), "SAME",
                                     dimension_numbers=dn, precision=hp)
    pad = ((0, 0), (1, 1), (1, 1), (0, 0))
    # TODO(synk): avg_pool folded as count_include_pad=True (matches this ref).
    avg = lax.reduce_window(x, 0.0, lax.add, (1, 3, 3, 1), (1, 1, 1, 1), pad) / 9.0
    mx = lax.reduce_window(x, -jnp.inf, lax.max, (1, 3, 3, 1), (1, 1, 1, 1), pad)
    return (alphas[1] * x + alphas[2] * conv3 + alphas[3] * conv1
            + alphas[4] * avg + alphas[5] * mx)


def _ref_cell(cell, s0_nchw, s1_nchw, weights):
    s0 = jnp.transpose(s0_nchw, (0, 2, 3, 1))
    s1 = jnp.transpose(s1_nchw, (0, 2, 3, 1))
    states = [s0, s1]
    offset = 0
    for _ in range(cell._steps):
        s = sum(_ref_mixed_op(hh, weights[offset + j], *cell.params[offset + j])
                for j, hh in enumerate(states))
        offset += len(states)
        states.append(s)
    out = sum(states[-cell._steps:])
    return jnp.transpose(out, (0, 3, 1, 2))


# ----------------------------------- main -----------------------------------

if __name__ == "__main__":
    key = jax.random.PRNGKey(0)
    steps, multiplier, emb_dim = 2, 2, 32
    n, c, h, w = 2, 4, 16, 16

    k_cell, k0, k1, ka = jax.random.split(key, 4)
    cell = CellPallas(steps, multiplier, emb_dim, c, c, c, k_cell)

    s0 = jax.random.normal(k0, (n, c, h, w), jnp.float32)
    s1 = jax.random.normal(k1, (n, c, h, w), jnp.float32)
    weights = jax.nn.softmax(
        jax.random.normal(ka, (cell.num_edges, NUM_PRIM), jnp.float32), axis=-1)

    fwd = jax.jit(cell.__call__)
    out = jax.block_until_ready(fwd(s0, s1, weights))
    assert out.shape == (n, c, h, w)

    ref = jax.block_until_ready(_ref_cell(cell, s0, s1, weights))
    if not np.allclose(np.asarray(out), np.asarray(ref), rtol=2e-2, atol=2e-2):
        err = float(np.max(np.abs(np.asarray(out) - np.asarray(ref))))
        raise AssertionError(
            f"Pallas Cell output mismatch vs JAX reference (max abs err {err})")

    print("KERNEL_OK")
</pallas_src>

<mosaic_0001>
module attributes {stable_mosaic.version = 11 : i64} {
  func.func @cell_kernel(%arg0: i32, %arg1: memref<9x384xf32, #tpu.memory_space<vmem>>, %arg2: memref<8x400xbf16, #tpu.memory_space<vmem>>, %arg3: memref<1x8x384xf32, #tpu.memory_space<vmem>>, %arg4: memref<1x8x384xf32, #tpu.memory_space<vmem>>, %arg5: memref<1x8x384xf32, #tpu.memory_space<vmem>>, %arg6: memref<240x384xbf16, #tpu.memory_space<vmem>>) attributes {dimension_semantics = [#tpu.dimension_semantics<parallel>], iteration_bounds = array<i64: 2>, scalar_prefetch = 0 : i64, scratch_operands = 1 : i64, tpu.core_type = #tpu.core_type<tc>, window_params = [{pipeline_mode = #tpu.pipeline_mode<synchronous>, transform_indices = @transform_0, window_bounds = array<i64: 9, 384>}, {pipeline_mode = #tpu.pipeline_mode<synchronous>, transform_indices = @transform_1, window_bounds = array<i64: 8, 400>}, {transform_indices = @transform_2, window_bounds = array<i64: 1, 8, 384>}, {transform_indices = @transform_3, window_bounds = array<i64: 1, 8, 384>}, {transform_indices = @transform_4, window_bounds = array<i64: 1, 8, 384>}]} {
    %c0 = arith.constant 0 : index
    %c0_0 = arith.constant 0 : index
    %0 = vector.load %arg1[%c0, %c0_0] : memref<9x384xf32, #tpu.memory_space<vmem>>, vector<9x384xf32>
    %1 = vector.extract_strided_slice %0 {offsets = [0, 0], sizes = [1, 384], strides = [1, 1]} : vector<9x384xf32> to vector<1x384xf32>
    %cst = arith.constant 5.000000e-01 : f32
    %2 = vector.broadcast %cst : f32 to vector<1x384xf32>
    %3 = arith.cmpf ogt, %1, %2 : vector<1x384xf32>
    %4 = vector.extract_strided_slice %0 {offsets = [1, 0], sizes = [1, 384], strides = [1, 1]} : vector<9x384xf32> to vector<1x384xf32>
    %cst_1 = arith.constant 5.000000e-01 : f32
    %5 = vector.broadcast %cst_1 : f32 to vector<1x384xf32>
    %6 = arith.cmpf ogt, %4, %5 : vector<1x384xf32>
    %7 = vector.extract_strided_slice %0 {offsets = [2, 0], sizes = [1, 384], strides = [1, 1]} : vector<9x384xf32> to vector<1x384xf32>
    %cst_2 = arith.constant 5.000000e-01 : f32
    %8 = vector.broadcast %cst_2 : f32 to vector<1x384xf32>
    %9 = arith.cmpf ogt, %7, %8 : vector<1x384xf32>
    %10 = vector.extract_strided_slice %0 {offsets = [3, 0], sizes = [1, 384], strides = [1, 1]} : vector<9x384xf32> to vector<1x384xf32>
    %cst_3 = arith.constant 5.000000e-01 : f32
    %11 = vector.broadcast %cst_3 : f32 to vector<1x384xf32>
    %12 = arith.cmpf ogt, %10, %11 : vector<1x384xf32>
    %13 = vector.extract_strided_slice %0 {offsets = [4, 0], sizes = [1, 384], strides = [1, 1]} : vector<9x384xf32> to vector<1x384xf32>
    %cst_4 = arith.constant 5.000000e-01 : f32
    %14 = vector.broadcast %cst_4 : f32 to vector<1x384xf32>
    %15 = arith.cmpf ogt, %13, %14 : vector<1x384xf32>
    %16 = vector.extract_strided_slice %0 {offsets = [5, 0], sizes = [1, 384], strides = [1, 1]} : vector<9x384xf32> to vector<1x384xf32>
    %cst_5 = arith.constant 5.000000e-01 : f32
    %17 = vector.broadcast %cst_5 : f32 to vector<1x384xf32>
    %18 = arith.cmpf ogt, %16, %17 : vector<1x384xf32>
    %19 = vector.extract_strided_slice %0 {offsets = [6, 0], sizes = [1, 384], strides = [1, 1]} : vector<9x384xf32> to vector<1x384xf32>
    %cst_6 = arith.constant 5.000000e-01 : f32
    %20 = vector.broadcast %cst_6 : f32 to vector<1x384xf32>
    %21 = arith.cmpf ogt, %19, %20 : vector<1x384xf32>
    %22 = vector.extract_strided_slice %0 {offsets = [7, 0], sizes = [1, 384], strides = [1, 1]} : vector<9x384xf32> to vector<1x384xf32>
    %cst_7 = arith.constant 5.000000e-01 : f32
    %23 = vector.broadcast %cst_7 : f32 to vector<1x384xf32>
    %24 = arith.cmpf ogt, %22, %23 : vector<1x384xf32>
    %25 = vector.extract_strided_slice %0 {offsets = [8, 0], sizes = [1, 384], strides = [1, 1]} : vector<9x384xf32> to vector<1x384xf32>
    %cst_8 = arith.constant 5.000000e-01 : f32
    %26 = vector.broadcast %cst_8 : f32 to vector<1x384xf32>
    %27 = arith.cmpf ogt, %25, %26 : vector<1x384xf32>
    %cst_9 = arith.constant 0.000000e+00 : f32
    %28 = vector.broadcast %cst_9 : f32 to vector<8x128xf32>
    %c0_10 = arith.constant 0 : index
    %c0_11 = arith.constant 0 : index
    %29 = vector.load %arg2[%c0_10, %c0_11] : memref<8x400xbf16, #tpu.memory_space<vmem>>, vector<8x400xbf16>
    %c0_12 = arith.constant 0 : index
    %c0_13 = arith.constant 0 : index
    %c0_14 = arith.constant 0 : index
    %30 = vector.load %arg3[%c0_12, %c0_13, %c0_14] : memref<1x8x384xf32, #tpu.memory_space<vmem>>, vector<1x8x384xf32>
    %31 = vector.shape_cast %30 : vector<1x8x384xf32> to vector<8x384xf32>
    %c0_15 = arith.constant 0 : index
    %c0_16 = arith.constant 0 : index
    %c0_17 = arith.constant 0 : index
    %32 = vector.load %arg4[%c0_15, %c0_16, %c0_17] : memref<1x8x384xf32, #tpu.memory_space<vmem>>, vector<1x8x384xf32>
    %33 = vector.shape_cast %32 : vector<1x8x384xf32> to vector<8x384xf32>
    %34 = tpu.concatenate %28, %31, %28 in 1 : vector<8x128xf32>, vector<8x384xf32>, vector<8x128xf32> -> vector<8x640xf32>
    %35 = vector.extract_strided_slice %34 {offsets = [0, 109], sizes = [8, 384], strides = [1, 1]} : vector<8x640xf32> to vector<8x384xf32>
    %36 = vector.extract_strided_slice %34 {offsets = [0, 110], sizes = [8, 384], strides = [1, 1]} : vector<8x640xf32> to vector<8x384xf32>
    %37 = vector.extract_strided_slice %34 {offsets = [0, 111], sizes = [8, 384], strides = [1, 1]} : vector<8x640xf32> to vector<8x384xf32>
    %38 = vector.extract_strided_slice %34 {offsets = [0, 127], sizes = [8, 384], strides = [1, 1]} : vector<8x640xf32> to vector<8x384xf32>
    %39 = vector.extract_strided_slice %34 {offsets = [0, 129], sizes = [8, 384], strides = [1, 1]} : vector<8x640xf32> to vector<8x384xf32>
    %40 = vector.extract_strided_slice %34 {offsets = [0, 145], sizes = [8, 384], strides = [1, 1]} : vector<8x640xf32> to vector<8x384xf32>
    %41 = vector.extract_strided_slice %34 {offsets = [0, 146], sizes = [8, 384], strides = [1, 1]} : vector<8x640xf32> to vector<8x384xf32>
    %42 = vector.extract_strided_slice %34 {offsets = [0, 147], sizes = [8, 384], strides = [1, 1]} : vector<8x640xf32> to vector<8x384xf32>
    %cst_18 = arith.constant 0xFF800000 : f32
    %43 = vector.shape_cast %3 : vector<1x384xi1> to vector<1x384xi1>
    %44 = vector.broadcast %43 : vector<1x384xi1> to vector<8x384xi1>
    %45 = vector.broadcast %cst_18 : f32 to vector<8x384xf32>
    %46 = arith.select %44, %35, %45 : vector<8x384xi1>, vector<8x384xf32>
    %47 = arith.maximumf %31, %46 : vector<8x384xf32>
    %cst_19 = arith.constant 0xFF800000 : f32
    %48 = vector.shape_cast %6 : vector<1x384xi1> to vector<1x384xi1>
    %49 = vector.broadcast %48 : vector<1x384xi1> to vector<8x384xi1>
    %50 = vector.broadcast %cst_19 : f32 to vector<8x384xf32>
    %51 = arith.select %49, %36, %50 : vector<8x384xi1>, vector<8x384xf32>
    %52 = arith.maximumf %47, %51 : vector<8x384xf32>
    %cst_20 = arith.constant 0xFF800000 : f32
    %53 = vector.shape_cast %9 : vector<1x384xi1> to vector<1x384xi1>
    %54 = vector.broadcast %53 : vector<1x384xi1> to vector<8x384xi1>
    %55 = vector.broadcast %cst_20 : f32 to vector<8x384xf32>
    %56 = arith.select %54, %37, %55 : vector<8x384xi1>, vector<8x384xf32>
    %57 = arith.maximumf %52, %56 : vector<8x384xf32>
    %cst_21 = arith.constant 0xFF800000 : f32
    %58 = vector.shape_cast %12 : vector<1x384xi1> to vector<1x384xi1>
    %59 = vector.broadcast %58 : vector<1x384xi1> to vector<8x384xi1>
    %60 = vector.broadcast %cst_21 : f32 to vector<8x384xf32>
    %61 = arith.select %59, %38, %60 : vector<8x384xi1>, vector<8x384xf32>
    %62 = arith.maximumf %57, %61 : vector<8x384xf32>
    %cst_22 = arith.constant 0xFF800000 : f32
    %63 = vector.shape_cast %18 : vector<1x384xi1> to vector<1x384xi1>
    %64 = vector.broadcast %63 : vector<1x384xi1> to vector<8x384xi1>
    %65 = vector.broadcast %cst_22 : f32 to vector<8x384xf32>
    %66 = arith.select %64, %39, %65 : vector<8x384xi1>, vector<8x384xf32>
    %67 = arith.maximumf %62, %66 : vector<8x384xf32>
    %cst_23 = arith.constant 0xFF800000 : f32
    %68 = vector.shape_cast %21 : vector<1x384xi1> to vector<1x384xi1>
    %69 = vector.broadcast %68 : vector<1x384xi1> to vector<8x384xi1>
    %70 = vector.broadcast %cst_23 : f32 to vector<8x384xf32>
    %71 = arith.select %69, %40, %70 : vector<8x384xi1>, vector<8x384xf32>
    %72 = arith.maximumf %67, %71 : vector<8x384xf32>
    %cst_24 = arith.constant 0xFF800000 : f32
    %73 = vector.shape_cast %24 : vector<1x384xi1> to vector<1x384xi1>
    %74 = vector.broadcast %73 : vector<1x384xi1> to vector<8x384xi1>
    %75 = vector.broadcast %cst_24 : f32 to vector<8x384xf32>
    %76 = arith.select %74, %41, %75 : vector<8x384xi1>, vector<8x384xf32>
    %77 = arith.maximumf %72, %76 : vector<8x384xf32>
    %cst_25 = arith.constant 0xFF800000 : f32
    %78 = vector.shape_cast %27 : vector<1x384xi1> to vector<1x384xi1>
    %79 = vector.broadcast %78 : vector<1x384xi1> to vector<8x384xi1>
    %80 = vector.broadcast %cst_25 : f32 to vector<8x384xf32>
    %81 = arith.select %79, %42, %80 : vector<8x384xi1>, vector<8x384xf32>
    %82 = arith.maximumf %77, %81 : vector<8x384xf32>
    %83 = tpu.concatenate %35, %36, %37, %38, %31, %39, %40, %41, %42, %82 in 0 : vector<8x384xf32>, vector<8x384xf32>, vector<8x384xf32>, vector<8x384xf32>, vector<8x384xf32>, vector<8x384xf32>, vector<8x384xf32>, vector<8x384xf32>, vector<8x384xf32>, vector<8x384xf32> -> vector<80x384xf32>
    %84 = arith.truncf %83 : vector<80x384xf32> to vector<80x384xbf16>
    %c0_26 = arith.constant 0 : index
    %c0_27 = arith.constant 0 : index
    %85 = vector.load %arg6[%c0_26, %c0_27] : memref<240x384xbf16, #tpu.memory_space<vmem>>, vector<80x384xbf16>
    tpu.vector_store %arg6[%c0_26, %c0_27], %84 {strides = array<i32>} : memref<240x384xbf16, #tpu.memory_space<vmem>>, vector<80x384xbf16>,
    %86 = tpu.concatenate %28, %33, %28 in 1 : vector<8x128xf32>, vector<8x384xf32>, vector<8x128xf32> -> vector<8x640xf32>
    %87 = vector.extract_strided_slice %86 {offsets = [0, 109], sizes = [8, 384], strides = [1, 1]} : vector<8x640xf32> to vector<8x384xf32>
    %88 = vector.extract_strided_slice %86 {offsets = [0, 110], sizes = [8, 384], strides = [1, 1]} : vector<8x640xf32> to vector<8x384xf32>
    %89 = vector.extract_strided_slice %86 {offsets = [0, 111], sizes = [8, 384], strides = [1, 1]} : vector<8x640xf32> to vector<8x384xf32>
    %90 = vector.extract_strided_slice %86 {offsets = [0, 127], sizes = [8, 384], strides = [1, 1]} : vector<8x640xf32> to vector<8x384xf32>
    %91 = vector.extract_strided_slice %86 {offsets = [0, 129], sizes = [8, 384], strides = [1, 1]} : vector<8x640xf32> to vector<8x384xf32>
    %92 = vector.extract_strided_slice %86 {offsets = [0, 145], sizes = [8, 384], strides = [1, 1]} : vector<8x640xf32> to vector<8x384xf32>
    %93 = vector.extract_strided_slice %86 {offsets = [0, 146], sizes = [8, 384], strides = [1, 1]} : vector<8x640xf32> to vector<8x384xf32>
    %94 = vector.extract_strided_slice %86 {offsets = [0, 147], sizes = [8, 384], strides = [1, 1]} : vector<8x640xf32> to vector<8x384xf32>
    %cst_28 = arith.constant 0xFF800000 : f32
    %95 = vector.shape_cast %3 : vector<1x384xi1> to vector<1x384xi1>
    %96 = vector.broadcast %95 : vector<1x384xi1> to vector<8x384xi1>
    %97 = vector.broadcast %cst_28 : f32 to vector<8x384xf32>
    %98 = arith.select %96, %87, %97 : vector<8x384xi1>, vector<8x384xf32>
    %99 = arith.maximumf %33, %98 : vector<8x384xf32>
    %cst_29 = arith.constant 0xFF800000 : f32
    %100 = vector.shape_cast %6 : vector<1x384xi1> to vector<1x384xi1>
    %101 = vector.broadcast %100 : vector<1x384xi1> to vector<8x384xi1>
    %102 = vector.broadcast %cst_29 : f32 to vector<8x384xf32>
    %103 = arith.select %101, %88, %102 : vector<8x384xi1>, vector<8x384xf32>
    %104 = arith.maximumf %99, %103 : vector<8x384xf32>
    %cst_30 = arith.constant 0xFF800000 : f32
    %105 = vector.shape_cast %9 : vector<1x384xi1> to vector<1x384xi1>
    %106 = vector.broadcast %105 : vector<1x384xi1> to vector<8x384xi1>
    %107 = vector.broadcast %cst_30 : f32 to vector<8x384xf32>
    %108 = arith.select %106, %89, %107 : vector<8x384xi1>, vector<8x384xf32>
    %109 = arith.maximumf %104, %108 : vector<8x384xf32>
    %cst_31 = arith.constant 0xFF800000 : f32
    %110 = vector.shape_cast %12 : vector<1x384xi1> to vector<1x384xi1>
    %111 = vector.broadcast %110 : vector<1x384xi1> to vector<8x384xi1>
    %112 = vector.broadcast %cst_31 : f32 to vector<8x384xf32>
    %113 = arith.select %111, %90, %112 : vector<8x384xi1>, vector<8x384xf32>
    %114 = arith.maximumf %109, %113 : vector<8x384xf32>
    %cst_32 = arith.constant 0xFF800000 : f32
    %115 = vector.shape_cast %18 : vector<1x384xi1> to vector<1x384xi1>
    %116 = vector.broadcast %115 : vector<1x384xi1> to vector<8x384xi1>
    %117 = vector.broadcast %cst_32 : f32 to vector<8x384xf32>
    %118 = arith.select %116, %91, %117 : vector<8x384xi1>, vector<8x384xf32>
    %119 = arith.maximumf %114, %118 : vector<8x384xf32>
    %cst_33 = arith.constant 0xFF800000 : f32
    %120 = vector.shape_cast %21 : vector<1x384xi1> to vector<1x384xi1>
    %121 = vector.broadcast %120 : vector<1x384xi1> to vector<8x384xi1>
    %122 = vector.broadcast %cst_33 : f32 to vector<8x384xf32>
    %123 = arith.select %121, %92, %122 : vector<8x384xi1>, vector<8x384xf32>
    %124 = arith.maximumf %119, %123 : vector<8x384xf32>
    %cst_34 = arith.constant 0xFF800000 : f32
    %125 = vector.shape_cast %24 : vector<1x384xi1> to vector<1x384xi1>
    %126 = vector.broadcast %125 : vector<1x384xi1> to vector<8x384xi1>
    %127 = vector.broadcast %cst_34 : f32 to vector<8x384xf32>
    %128 = arith.select %126, %93, %127 : vector<8x384xi1>, vector<8x384xf32>
    %129 = arith.maximumf %124, %128 : vector<8x384xf32>
    %cst_35 = arith.constant 0xFF800000 : f32
    %130 = vector.shape_cast %27 : vector<1x384xi1> to vector<1x384xi1>
    %131 = vector.broadcast %130 : vector<1x384xi1> to vector<8x384xi1>
    %132 = vector.broadcast %cst_35 : f32 to vector<8x384xf32>
    %133 = arith.select %131, %94, %132 : vector<8x384xi1>, vector<8x384xf32>
    %134 = arith.maximumf %129, %133 : vector<8x384xf32>
    %135 = tpu.concatenate %87, %88, %89, %90, %33, %91, %92, %93, %94, %134 in 0 : vector<8x384xf32>, vector<8x384xf32>, vector<8x384xf32>, vector<8x384xf32>, vector<8x384xf32>, vector<8x384xf32>, vector<8x384xf32>, vector<8x384xf32>, vector<8x384xf32>, vector<8x384xf32> -> vector<80x384xf32>
    %136 = arith.truncf %135 : vector<80x384xf32> to vector<80x384xbf16>
    %c80 = arith.constant 80 : index
    %c0_36 = arith.constant 0 : index
    %137 = vector.load %arg6[%c80, %c0_36] : memref<240x384xbf16, #tpu.memory_space<vmem>>, vector<80x384xbf16>
    tpu.vector_store %arg6[%c80, %c0_36], %136 {strides = array<i32>} : memref<240x384xbf16, #tpu.memory_space<vmem>>, vector<80x384xbf16>,
    %138 = vector.extract_strided_slice %29 {offsets = [0, 0], sizes = [8, 160], strides = [1, 1]} : vector<8x400xbf16> to vector<8x160xbf16>
    %c0_37 = arith.constant 0 : index
    %c0_38 = arith.constant 0 : index
    %139 = vector.load %arg6[%c0_37, %c0_38] : memref<240x384xbf16, #tpu.memory_space<vmem>>, vector<160x384xbf16>
    %cst_39 = arith.constant dense<0.000000e+00> : vector<8x384xf32>
    %140 = tpu.matmul %138, %139, %cst_39 {dimension_numbers = #tpu.dot_dimension_numbers<[1], [0], [0], [1], [0, 0, 1, 1], [], []>} : vector<8x160xbf16>, vector<160x384xbf16>, vector<8x384xf32> -> vector<8x384xf32>
    %cst_40 = arith.constant 0.000000e+00 : f32
    %141 = vector.shape_cast %15 : vector<1x384xi1> to vector<1x384xi1>
    %142 = vector.broadcast %141 : vector<1x384xi1> to vector<8x384xi1>
    %143 = vector.broadcast %cst_40 : f32 to vector<8x384xf32>
    %144 = arith.select %142, %140, %143 : vector<8x384xi1>, vector<8x384xf32>
    %145 = tpu.concatenate %28, %144, %28 in 1 : vector<8x128xf32>, vector<8x384xf32>, vector<8x128xf32> -> vector<8x640xf32>
    %146 = vector.extract_strided_slice %145 {offsets = [0, 109], sizes = [8, 384], strides = [1, 1]} : vector<8x640xf32> to vector<8x384xf32>
    %147 = vector.extract_strided_slice %145 {offsets = [0, 110], sizes = [8, 384], strides = [1, 1]} : vector<8x640xf32> to vector<8x384xf32>
    %148 = vector.extract_strided_slice %145 {offsets = [0, 111], sizes = [8, 384], strides = [1, 1]} : vector<8x640xf32> to vector<8x384xf32>
    %149 = vector.extract_strided_slice %145 {offsets = [0, 127], sizes = [8, 384], strides = [1, 1]} : vector<8x640xf32> to vector<8x384xf32>
    %150 = vector.extract_strided_slice %145 {offsets = [0, 129], sizes = [8, 384], strides = [1, 1]} : vector<8x640xf32> to vector<8x384xf32>
    %151 = vector.extract_strided_slice %145 {offsets = [0, 145], sizes = [8, 384], strides = [1, 1]} : vector<8x640xf32> to vector<8x384xf32>
    %152 = vector.extract_strided_slice %145 {offsets = [0, 146], sizes = [8, 384], strides = [1, 1]} : vector<8x640xf32> to vector<8x384xf32>
    %153 = vector.extract_strided_slice %145 {offsets = [0, 147], sizes = [8, 384], strides = [1, 1]} : vector<8x640xf32> to vector<8x384xf32>
    %cst_41 = arith.constant 0xFF800000 : f32
    %154 = vector.shape_cast %3 : vector<1x384xi1> to vector<1x384xi1>
    %155 = vector.broadcast %154 : vector<1x384xi1> to vector<8x384xi1>
    %156 = vector.broadcast %cst_41 : f32 to vector<8x384xf32>
    %157 = arith.select %155, %146, %156 : vector<8x384xi1>, vector<8x384xf32>
    %158 = arith.maximumf %144, %157 : vector<8x384xf32>
    %cst_42 = arith.constant 0xFF800000 : f32
    %159 = vector.shape_cast %6 : vector<1x384xi1> to vector<1x384xi1>
    %160 = vector.broadcast %159 : vector<1x384xi1> to vector<8x384xi1>
    %161 = vector.broadcast %cst_42 : f32 to vector<8x384xf32>
    %162 = arith.select %160, %147, %161 : vector<8x384xi1>, vector<8x384xf32>
    %163 = arith.maximumf %158, %162 : vector<8x384xf32>
    %cst_43 = arith.constant 0xFF800000 : f32
    %164 = vector.shape_cast %9 : vector<1x384xi1> to vector<1x384xi1>
    %165 = vector.broadcast %164 : vector<1x384xi1> to vector<8x384xi1>
    %166 = vector.broadcast %cst_43 : f32 to vector<8x384xf32>
    %167 = arith.select %165, %148, %166 : vector<8x384xi1>, vector<8x384xf32>
    %168 = arith.maximumf %163, %167 : vector<8x384xf32>
    %cst_44 = arith.constant 0xFF800000 : f32
    %169 = vector.shape_cast %12 : vector<1x384xi1> to vector<1x384xi1>
    %170 = vector.broadcast %169 : vector<1x384xi1> to vector<8x384xi1>
    %171 = vector.broadcast %cst_44 : f32 to vector<8x384xf32>
    %172 = arith.select %170, %149, %171 : vector<8x384xi1>, vector<8x384xf32>
    %173 = arith.maximumf %168, %172 : vector<8x384xf32>
    %cst_45 = arith.constant 0xFF800000 : f32
    %174 = vector.shape_cast %18 : vector<1x384xi1> to vector<1x384xi1>
    %175 = vector.broadcast %174 : vector<1x384xi1> to vector<8x384xi1>
    %176 = vector.broadcast %cst_45 : f32 to vector<8x384xf32>
    %177 = arith.select %175, %150, %176 : vector<8x384xi1>, vector<8x384xf32>
    %178 = arith.maximumf %173, %177 : vector<8x384xf32>
    %cst_46 = arith.constant 0xFF800000 : f32
    %179 = vector.shape_cast %21 : vector<1x384xi1> to vector<1x384xi1>
    %180 = vector.broadcast %179 : vector<1x384xi1> to vector<8x384xi1>
    %181 = vector.broadcast %cst_46 : f32 to vector<8x384xf32>
    %182 = arith.select %180, %151, %181 : vector<8x384xi1>, vector<8x384xf32>
    %183 = arith.maximumf %178, %182 : vector<8x384xf32>
    %cst_47 = arith.constant 0xFF800000 : f32
    %184 = vector.shape_cast %24 : vector<1x384xi1> to vector<1x384xi1>
    %185 = vector.broadcast %184 : vector<1x384xi1> to vector<8x384xi1>
    %186 = vector.broadcast %cst_47 : f32 to vector<8x384xf32>
    %187 = arith.select %185, %152, %186 : vector<8x384xi1>, vector<8x384xf32>
    %188 = arith.maximumf %183, %187 : vector<8x384xf32>
    %cst_48 = arith.constant 0xFF800000 : f32
    %189 = vector.shape_cast %27 : vector<1x384xi1> to vector<1x384xi1>
    %190 = vector.broadcast %189 : vector<1x384xi1> to vector<8x384xi1>
    %191 = vector.broadcast %cst_48 : f32 to vector<8x384xf32>
    %192 = arith.select %190, %153, %191 : vector<8x384xi1>, vector<8x384xf32>
    %193 = arith.maximumf %188, %192 : vector<8x384xf32>
    %194 = tpu.concatenate %146, %147, %148, %149, %144, %150, %151, %152, %153, %193 in 0 : vector<8x384xf32>, vector<8x384xf32>, vector<8x384xf32>, vector<8x384xf32>, vector<8x384xf32>, vector<8x384xf32>, vector<8x384xf32>, vector<8x384xf32>, vector<8x384xf32>, vector<8x384xf32> -> vector<80x384xf32>
    %195 = arith.truncf %194 : vector<80x384xf32> to vector<80x384xbf16>
    %c160 = arith.constant 160 : index
    %c0_49 = arith.constant 0 : index
    %196 = vector.load %arg6[%c160, %c0_49] : memref<240x384xbf16, #tpu.memory_space<vmem>>, vector<80x384xbf16>
    tpu.vector_store %arg6[%c160, %c0_49], %195 {strides = array<i32>} : memref<240x384xbf16, #tpu.memory_space<vmem>>, vector<80x384xbf16>,
    %197 = vector.extract_strided_slice %29 {offsets = [0, 160], sizes = [8, 240], strides = [1, 1]} : vector<8x400xbf16> to vector<8x240xbf16>
    %c0_50 = arith.constant 0 : index
    %c0_51 = arith.constant 0 : index
    %198 = vector.load %arg6[%c0_50, %c0_51] : memref<240x384xbf16, #tpu.memory_space<vmem>>, vector<240x384xbf16>
    %cst_52 = arith.constant dense<0.000000e+00> : vector<8x384xf32>
    %199 = tpu.matmul %197, %198, %cst_52 {dimension_numbers = #tpu.dot_dimension_numbers<[1], [0], [0], [1], [0, 0, 1, 1], [], []>} : vector<8x240xbf16>, vector<240x384xbf16>, vector<8x384xf32> -> vector<8x384xf32>
    %200 = arith.addf %140, %199 : vector<8x384xf32>
    %c0_53 = arith.constant 0 : index
    %c0_54 = arith.constant 0 : index
    %c0_55 = arith.constant 0 : index
    %201 = vector.load %arg5[%c0_53, %c0_54, %c0_55] : memref<1x8x384xf32, #tpu.memory_space<vmem>>, vector<1x8x384xf32>
    %202 = vector.shape_cast %201 : vector<1x8x384xf32> to vector<8x384xf32>
    %203 = vector.shape_cast %200 : vector<8x384xf32> to vector<1x8x384xf32>
    tpu.vector_store %arg5[%c0_53, %c0_54, %c0_55], %203 {strides = array<i32>} : memref<1x8x384xf32, #tpu.memory_space<vmem>>, vector<1x8x384xf32>,
    return
  }
  func.func @transform_0(%arg0: i32) -> (i32, i32) {
    %c0_i32 = arith.constant 0 : i32
    %c0_i32_0 = arith.constant 0 : i32
    %c0_i32_1 = arith.constant 0 : i32
    return %c0_i32, %c0_i32_0 : i32, i32
  }
  func.func @transform_1(%arg0: i32) -> (i32, i32) {
    %c0_i32 = arith.constant 0 : i32
    %c0_i32_0 = arith.constant 0 : i32
    %c0_i32_1 = arith.constant 0 : i32
    return %c0_i32, %c0_i32_0 : i32, i32
  }
  func.func @transform_2(%arg0: i32) -> (i32, i32, i32) {
    %c0_i32 = arith.constant 0 : i32
    %c0_i32_0 = arith.constant 0 : i32
    %c0_i32_1 = arith.constant 0 : i32
    return %arg0, %c0_i32, %c0_i32_0 : i32, i32, i32
  }
  func.func @transform_3(%arg0: i32) -> (i32, i32, i32) {
    %c0_i32 = arith.constant 0 : i32
    %c0_i32_0 = arith.constant 0 : i32
    %c0_i32_1 = arith.constant 0 : i32
    return %arg0, %c0_i32, %c0_i32_0 : i32, i32, i32
  }
  func.func @transform_4(%arg0: i32) -> (i32, i32, i32) {
    %c0_i32 = arith.constant 0 : i32
    %c0_i32_0 = arith.constant 0 : i32
    %c0_i32_1 = arith.constant 0 : i32
    return %arg0, %c0_i32, %c0_i32_0 : i32, i32, i32
  }
}

</mosaic_0001>

<llo_original>
// kernel: a_call__.1
$region0: #{a_call__.1}
  #allocation0 [shape = 'u32[]', space=smem, size = 0x4, offset = 0x4, fixed_abs, tag = 'smem constant byte address 0x4 - core index']
  #allocation1 [shape = 'u32[72,128]{1,0:T(1,128)}', space=vmem, size = 0x9000, scoped, tag = 'internal scratch']
  #allocation2 [shape = 'bf16[240,384]{1,0:T(8,128)(2,1)}', space=vmem, size = 0x2d000, scoped, tag = 'scratch operand']
  %s0 = inlined_call_operand.vmem [shape: f32[9,384], index: 0, kind: input, shape index: {}]
  %s1 = inlined_call_operand.vmem [shape: bf16[8,400], index: 1, kind: input, shape index: {}]
  %s2 = inlined_call_operand.vmem [shape: f32[2,8,384], index: 2, kind: input, shape index: {}]
  %s3 = inlined_call_operand.vmem [shape: f32[2,8,384], index: 3, kind: input, shape index: {}]
  %s4 = inlined_call_operand.vmem [shape: f32[2,8,384], index: 4, kind: output, shape index: {}]
  %s5 = sld [smem:[#allocation0]]
  $region49: #{a_call__.1} parent=0
    _
  %s7 = ssub.s32 1, %s5
  %s8 = scalar_select 0, %s7, %s5
  loop: start=0, step=1, limit=4
  $region2: #{a_call__.1} parent=0 // loop_pre_header
    _
  $region3: #{a_call__.1} parent=0 // loop_header
    %s10 = sphi 0, %s14
    %p11 = scmp.ge.s32.totalorder %s10, 4
    %s18 = sphi 0, %s18
    %s20 = sphi 0, %s18
    %s21 = sphi 0, %s20
    %s35 = sphi 0, %s21
    %s39 = sphi 0, %s39
    %s41 = sphi 0, %s39
    %s42 = sphi 0, %s41
    %s56 = sphi 0, %s42
    %s62 = sphi 0, %s64
    %s65 = sphi 0, %s62
    %s66 = sphi 0, %s65
    %s82 = sphi 0, %s66
    %s88 = sphi 0, %s90
    %s91 = sphi 0, %s88
    %s92 = sphi 0, %s91
    %s108 = sphi 0, %s92
    %s114 = sphi 0, %s116
    %s117 = sphi 0, %s114
    %s118 = sphi 0, %s117
    %s134 = sphi 0, %s118
  $region4: #{a_call__.1} parent=0 // loop_header_branch
    %13 = sbr.rel (%p11) target = $region8
  $region5: #{a_call__.1} parent=0 // loop_body
    %s15 = ssub.s32 %s10, 1
    %s16 = ssub.s32 %s10, 2
    %s17 = sadd.s32 %s10, 1
    %s19 = sadd.s32 %s18, 1
    %p22 = scmp.eq.s32.totalorder %s10, 1
    %p23 = scmp.ne.s32.totalorder %s18, %s20
    %p24 = scmp.eq.s32.totalorder %s10, 0
    %p25 = por %p23, %p24
    %p26 = scmp.ne.s32.totalorder %s18, %s20
    %p27 = scmp.eq.s32.totalorder %s15, 1
    %p28 = por %p26, %p27
    %p29 = scmp.ne.s32.totalorder %s20, %s21
    %p30 = scmp.eq.s32.totalorder %s15, 0
    %p31 = por %p29, %p30
    %p32 = scmp.ne.s32.totalorder %s20, %s21
    %p33 = scmp.eq.s32.totalorder %s16, 1
    %p34 = por %p32, %p33
    %p36 = scmp.ne.s32.totalorder %s21, %s35
    %p37 = scmp.eq.s32.totalorder %s16, 0
    %p38 = por %p36, %p37
    %s40 = sadd.s32 %s39, 1
    %p43 = scmp.eq.s32.totalorder %s10, 1
    %p44 = scmp.ne.s32.totalorder %s39, %s41
    %p45 = scmp.eq.s32.totalorder %s10, 0
    %p46 = por %p44, %p45
    %p47 = scmp.ne.s32.totalorder %s39, %s41
    %p48 = scmp.eq.s32.totalorder %s15, 1
    %p49 = por %p47, %p48
    %p50 = scmp.ne.s32.totalorder %s41, %s42
    %p51 = scmp.eq.s32.totalorder %s15, 0
    %p52 = por %p50, %p51
    %p53 = scmp.ne.s32.totalorder %s41, %s42
    %p54 = scmp.eq.s32.totalorder %s16, 1
    %p55 = por %p53, %p54
    %p57 = scmp.ne.s32.totalorder %s42, %s56
    %p58 = scmp.eq.s32.totalorder %s16, 0
    %p59 = por %p57, %p58
    %s60 = ssub.s32 %s10, %s17
    %p61 = scmp.eq.s32.totalorder %s60, 0
    %s63 = sadd.s32 %s62, 1
    %s64 = scalar_select %p61, %s62, %s63
    %p67 = pneg %p61
    %p68 = scmp.eq.s32.totalorder %s10, 1
    %p69 = por %p67, %p68
    %p70 = scmp.ne.s32.totalorder %s62, %s65
    %p71 = scmp.eq.s32.totalorder %s10, 0
    %p72 = por %p70, %p71
    %p73 = scmp.ne.s32.totalorder %s62, %s65
    %p74 = scmp.eq.s32.totalorder %s15, 1
    %p75 = por %p73, %p74
    %p76 = scmp.ne.s32.totalorder %s65, %s66
    %p77 = scmp.eq.s32.totalorder %s15, 0
    %p78 = por %p76, %p77
    %p79 = scmp.ne.s32.totalorder %s65, %s66
    %p80 = scmp.eq.s32.totalorder %s16, 1
    %p81 = por %p79, %p80
    %p83 = scmp.ne.s32.totalorder %s66, %s82
    %p84 = scmp.eq.s32.totalorder %s16, 0
    %p85 = por %p83, %p84
    %s86 = ssub.s32 %s10, %s17
    %p87 = scmp.eq.s32.totalorder %s86, 0
    %s89 = sadd.s32 %s88, 1
    %s90 = scalar_select %p87, %s88, %s89
    %p93 = pneg %p87
    %p94 = scmp.eq.s32.totalorder %s10, 1
    %p95 = por %p93, %p94
    %p96 = scmp.ne.s32.totalorder %s88, %s91
    %p97 = scmp.eq.s32.totalorder %s10, 0
    %p98 = por %p96, %p97
    %p99 = scmp.ne.s32.totalorder %s88, %s91
    %p100 = scmp.eq.s32.totalorder %s15, 1
    %p101 = por %p99, %p100
    %p102 = scmp.ne.s32.totalorder %s91, %s92
    %p103 = scmp.eq.s32.totalorder %s15, 0
    %p104 = por %p102, %p103
    %p105 = scmp.ne.s32.totalorder %s91, %s92
    %p106 = scmp.eq.s32.totalorder %s16, 1
    %p107 = por %p105, %p106
    %p109 = scmp.ne.s32.totalorder %s92, %s108
    %p110 = scmp.eq.s32.totalorder %s16, 0
    %p111 = por %p109, %p110
    %s112 = ssub.s32 %s10, %s17
    %p113 = scmp.eq.s32.totalorder %s112, 0
    %s115 = sadd.s32 %s114, 1
    %s116 = scalar_select %p113, %s114, %s115
    %p119 = pneg %p113
    %p120 = scmp.eq.s32.totalorder %s10, 1
    %p121 = por %p119, %p120
    %p122 = scmp.ne.s32.totalorder %s114, %s117
    %p123 = scmp.eq.s32.totalorder %s10, 0
    %p124 = por %p122, %p123
    %p125 = scmp.ne.s32.totalorder %s114, %s117
    %p126 = scmp.eq.s32.totalorder %s15, 1
    %p127 = por %p125, %p126
    %p128 = scmp.ne.s32.totalorder %s117, %s118
    %p129 = scmp.eq.s32.totalorder %s15, 0
    %p130 = por %p128, %p129
    %p131 = scmp.ne.s32.totalorder %s117, %s118
    %p132 = scmp.eq.s32.totalorder %s16, 1
    %p133 = por %p131, %p132
    %p135 = scmp.ne.s32.totalorder %s118, %s134
    %p136 = scmp.eq.s32.totalorder %s16, 0
    %p137 = por %p135, %p136
    %p138 = scmp.le.s32.totalorder 1, %s10
    %p139 = scmp.lt.s32.totalorder %s10, 3
    %p140 = pnand %p138, %p139
    %p141 = pneg %p140
    // Predicated region
    $region9: #{a_call__.1} parent=5 // pred_check
      _
    $region10: #{a_call__.1} parent=5 // pred_check_branch
      %143 = sbr.rel (%p140) target = $region12
    $region11: #{a_call__.1} parent=5 // pred_region
      %s144 = ssub.s32 %s10, 1
      // Predicated region
      $region13: #{a_call__.1} parent=11 // pred_check
        %p145 = pneg %p31
      $region14: #{a_call__.1} parent=11 // pred_check_branch
        %147 = sbr.rel (%p145) target = $region16
      $region15: #{a_call__.1} parent=11 // pred_region
        _
      $region16: #{a_call__.1} parent=11 // pred_fallthru
        _
      // Predicated region
      $region17: #{a_call__.1} parent=11 // pred_check
        %p148 = pneg %p52
      $region18: #{a_call__.1} parent=11 // pred_check_branch
        %150 = sbr.rel (%p148) target = $region20
      $region19: #{a_call__.1} parent=11 // pred_region
        _
      $region20: #{a_call__.1} parent=11 // pred_fallthru
        _
    $region12: #{a_call__.1} parent=5 // pred_fallthru
      _
    %p151 = scmp.lt.s32.totalorder %s10, 2
    // Predicated region
    $region21: #{a_call__.1} parent=5 // pred_check
      %p152 = pneg %p151
    $region22: #{a_call__.1} parent=5 // pred_check_branch
      %154 = sbr.rel (%p152) target = $region24
    $region23: #{a_call__.1} parent=5 // pred_region
      // Predicated region
      $region25: #{a_call__.1} parent=23 // pred_check
        %p155 = pneg %p72
      $region26: #{a_call__.1} parent=23 // pred_check_branch
        %157 = sbr.rel (%p155) target = $region28
      $region27: #{a_call__.1} parent=23 // pred_region
        %p158 = scmp.lt.s32.totalorder %s10, 1
        %s159 = scalar_select %p158, %s10, 1
        %s160 = smul.addr %s159, 3
        %s161 = smul.addr %s160, 8
        %s162 = scalar_lea.vmem %s2, %s161
      $region28: #{a_call__.1} parent=23 // pred_fallthru
        _
      // Predicated region
      $region29: #{a_call__.1} parent=23 // pred_check
        %p163 = pneg %p98
      $region30: #{a_call__.1} parent=23 // pred_check_branch
        %165 = sbr.rel (%p163) target = $region32
      $region31: #{a_call__.1} parent=23 // pred_region
        %p166 = scmp.lt.s32.totalorder %s10, 1
        %s167 = scalar_select %p166, %s10, 1
        %s168 = smul.addr %s167, 3
        %s169 = smul.addr %s168, 8
        %s170 = scalar_lea.vmem %s3, %s169
      $region32: #{a_call__.1} parent=23 // pred_fallthru
        _
    $region24: #{a_call__.1} parent=5 // pred_fallthru
      _
    %p171 = scmp.le.s32.totalorder 1, %s10
    %p172 = scmp.lt.s32.totalorder %s10, 3
    %p173 = pnand %p171, %p172
    %p174 = pneg %p173
    // Predicated region
    $region33: #{a_call__.1} parent=5 // pred_check
      _
    $region34: #{a_call__.1} parent=5 // pred_check_branch
      %176 = sbr.rel (%p173) target = $region36
    $region35: #{a_call__.1} parent=5 // pred_region
      %s177 = ssub.s32 %s10, 1
      %p178 = pneg %p31
      %p179 = pneg %p28
      %p180 = pneg %p52
      %p181 = pneg %p49
      %p182 = scmp.lt.s32.totalorder %s15, 1
      %s183 = scalar_select %p182, %s15, 1
      %s184 = smul.addr %s183, 3
      %s185 = smul.addr %s184, 8
      %s186 = scalar_lea.vmem %s2, %s185
      %p187 = pneg %p78
      %p188 = pneg %p75
      %p189 = scmp.lt.s32.totalorder %s15, 1
      %s190 = scalar_select %p189, %s15, 1
      %s191 = smul.addr %s190, 3
      %s192 = smul.addr %s191, 8
      %s193 = scalar_lea.vmem %s3, %s192
      %p194 = pneg %p104
      %p195 = pneg %p101
      %p196 = pneg %p130
      %p197 = pneg %p127
      %p198 = scmp.lt.s32.totalorder %s15, 1
      %s199 = scalar_select %p198, %s15, 1
      %s200 = smul.addr %s199, 3
      %s201 = smul.addr %s200, 8
      %s202 = scalar_lea.vmem %s4, %s201
      %p203 = scmp.lt.s32.totalorder %s15, 1
      %s204 = scalar_select %p203, %s15, 1
      %s205 = smul.addr %s204, 3
      %s206 = smul.addr %s205, 8
      %s207 = scalar_lea.vmem %s2, %s206
      %p208 = scmp.lt.s32.totalorder %s15, 1
      %s209 = scalar_select %p208, %s15, 1
      %s210 = smul.addr %s209, 3
      %s211 = smul.addr %s210, 8
      %s212 = scalar_lea.vmem %s3, %s211
      %p213 = scmp.lt.s32.totalorder %s15, 1
      %s214 = scalar_select %p213, %s15, 1
      %s215 = smul.addr %s214, 3
      %s216 = smul.addr %s215, 8
      %s217 = scalar_lea.vmem %s4, %s216
      %v219 = vld [vmem:[%s0] sm:$0xff]
      %v220 = vld [vmem:[%s0 + $0x8] sm:$0xff]
      %v221 = vld [vmem:[%s0 + $0x10] sm:$0xff]
      %v222 = vld [vmem:[%s0 + $0x18] sm:$0x1]
      %v223 = vld [vmem:[%s0 + $0x20] sm:$0x1]
      %v224 = vld [vmem:[%s0 + $0x28] sm:$0x1]
      %vm225 = vcmp.gt.f32.partialorder %v219, 0.5
      %vm226 = vcmp.gt.f32.partialorder %v220, 0.5
      %vm227 = vcmp.gt.f32.partialorder %v221, 0.5
      %vm228 = vcmp.gt.f32.partialorder %v222, 0.5
      %vm229 = vcmp.gt.f32.partialorder %v223, 0.5
      %vm230 = vcmp.gt.f32.partialorder %v224, 0.5
      %v231 = vld [vmem:[%s1] sm:$0xff]
      %v232 = vld [vmem:[%s1 + $0x8] sm:$0xff]
      %v233 = vld [vmem:[%s207] sm:$0xff]
      %v234 = vld [vmem:[%s207 + $0x8] sm:$0xff]
      %v235 = vld [vmem:[%s207 + $0x10] sm:$0xff]
      %v236 = vld [vmem:[%s212] sm:$0xff]
      %v237 = vld [vmem:[%s212 + $0x8] sm:$0xff]
      %v238 = vld [vmem:[%s212 + $0x10] sm:$0xff]
      %v239 = vsel %vm225, 1, 0
      %v240 = vsel %vm226, 1, 0
      %v241 = vsel %vm227, 1, 0
      %v242 = vperm.slane %v239, 0
      %v243 = vperm.slane %v240, 0
      %v244 = vperm.slane %v241, 0
      %vm245 = vcmp.eq.s32.totalorder %v242, 1
      %vm246 = vcmp.eq.s32.totalorder %v243, 1
      %vm247 = vcmp.eq.s32.totalorder %v244, 1
      %252 = vrot.lane.b32.xlu0 0.0, 19
      %v253 = vpop.permute.xlu0 %252
      %254 = vrot.lane.b32.xlu0 %v233, 19
      %v255 = vpop.permute.xlu0 %254
      %256 = vrot.lane.b32.xlu0 %v234, 19
      %v257 = vpop.permute.xlu0 %256
      %258 = vrot.lane.b32.xlu0 %v235, 19
      %v259 = vpop.permute.xlu0 %258
      %vm260 = vcmask 154624
      %v261 = vsel %vm260, %v253, %v255
      %v262 = vsel %vm260, %v255, %v257
      %v263 = vsel %vm260, %v257, %v259
      %v267 = vsel %vm245, %v261, -inf
      %v268 = vsel %vm246, %v262, -inf
      %v269 = vsel %vm247, %v263, -inf
      %v270 = vmax.f32 %v233, %v267
      %v271 = vmax.f32 %v234, %v268
      %v272 = vmax.f32 %v235, %v269
      %v273 = vperm.slane %v239, 1
      %v274 = vperm.slane %v240, 1
      %v275 = vperm.slane %v241, 1
      %vm276 = vcmp.eq.s32.totalorder %v273, 1
      %vm277 = vcmp.eq.s32.totalorder %v274, 1
      %vm278 = vcmp.eq.s32.totalorder %v275, 1
      %279 = vrot.lane.b32.xlu0 0.0, 18
      %v280 = vpop.permute.xlu0 %279
      %281 = vrot.lane.b32.xlu0 %v233, 18
      %v282 = vpop.permute.xlu0 %281
      %283 = vrot.lane.b32.xlu0 %v234, 18
      %v284 = vpop.permute.xlu0 %283
      %285 = vrot.lane.b32.xlu0 %v235, 18
      %v286 = vpop.permute.xlu0 %285
      %vm287 = vcmask 146432
      %v288 = vsel %vm287, %v280, %v282
      %v289 = vsel %vm287, %v282, %v284
      %v290 = vsel %vm287, %v284, %v286
      %v294 = vsel %vm276, %v288, -inf
      %v295 = vsel %vm277, %v289, -inf
      %v296 = vsel %vm278, %v290, -inf
      %v297 = vmax.f32 %v270, %v294
      %v298 = vmax.f32 %v271, %v295
      %v299 = vmax.f32 %v272, %v296
      %v300 = vperm.slane %v239, 2
      %v301 = vperm.slane %v240, 2
      %v302 = vperm.slane %v241, 2
      %vm303 = vcmp.eq.s32.totalorder %v300, 1
      %vm304 = vcmp.eq.s32.totalorder %v301, 1
      %vm305 = vcmp.eq.s32.totalorder %v302, 1
      %306 = vrot.lane.b32.xlu0 0.0, 17
      %v307 = vpop.permute.xlu0 %306
      %308 = vrot.lane.b32.xlu0 %v233, 17
      %v309 = vpop.permute.xlu0 %308
      %310 = vrot.lane.b32.xlu0 %v234, 17
      %v311 = vpop.permute.xlu0 %310
      %312 = vrot.lane.b32.xlu0 %v235, 17
      %v313 = vpop.permute.xlu0 %312
      %vm314 = vcmask 138240
      %v315 = vsel %vm314, %v307, %v309
      %v316 = vsel %vm314, %v309, %v311
      %v317 = vsel %vm314, %v311, %v313
      %v321 = vsel %vm303, %v315, -inf
      %v322 = vsel %vm304, %v316, -inf
      %v323 = vsel %vm305, %v317, -inf
      %v324 = vmax.f32 %v297, %v321
      %v325 = vmax.f32 %v298, %v322
      %v326 = vmax.f32 %v299, %v323
      %v327 = vperm.slane %v239, 3
      %v328 = vperm.slane %v240, 3
      %v329 = vperm.slane %v241, 3
      %vm330 = vcmp.eq.s32.totalorder %v327, 1
      %vm331 = vcmp.eq.s32.totalorder %v328, 1
      %vm332 = vcmp.eq.s32.totalorder %v329, 1
      %333 = vrot.lane.b32.xlu0 0.0, 1
      %v334 = vpop.permute.xlu0 %333
      %335 = vrot.lane.b32.xlu0 %v233, 1
      %v336 = vpop.permute.xlu0 %335
      %337 = vrot.lane.b32.xlu0 %v234, 1
      %v338 = vpop.permute.xlu0 %337
      %339 = vrot.lane.b32.xlu0 %v235, 1
      %v340 = vpop.permute.xlu0 %339
      %vm341 = vcmask 7168
      %v342 = vsel %vm341, %v334, %v336
      %v343 = vsel %vm341, %v336, %v338
      %v344 = vsel %vm341, %v338, %v340
      %v348 = vsel %vm330, %v342, -inf
      %v349 = vsel %vm331, %v343, -inf
      %v350 = vsel %vm332, %v344, -inf
      %v351 = vmax.f32 %v324, %v348
      %v352 = vmax.f32 %v325, %v349
      %v353 = vmax.f32 %v326, %v350
      %v354 = vperm.slane %v239, 5
      %v355 = vperm.slane %v240, 5
      %v356 = vperm.slane %v241, 5
      %vm357 = vcmp.eq.s32.totalorder %v354, 1
      %vm358 = vcmp.eq.s32.totalorder %v355, 1
      %vm359 = vcmp.eq.s32.totalorder %v356, 1
      %360 = vrot.lane.b32.xlu0 %v233, 127
      %v361 = vpop.permute.xlu0 %360
      %362 = vrot.lane.b32.xlu0 %v234, 127
      %v363 = vpop.permute.xlu0 %362
      %364 = vrot.lane.b32.xlu0 %v235, 127
      %v365 = vpop.permute.xlu0 %364
      %366 = vrot.lane.b32.xlu0 0.0, 127
      %v367 = vpop.permute.xlu0 %366
      %vm368 = vcmask 1039360
      %v369 = vsel %vm368, %v361, %v363
      %v370 = vsel %vm368, %v363, %v365
      %v371 = vsel %vm368, %v365, %v367
      %v375 = vsel %vm357, %v369, -inf
      %v376 = vsel %vm358, %v370, -inf
      %v377 = vsel %vm359, %v371, -inf
      %v378 = vmax.f32 %v351, %v375
      %v379 = vmax.f32 %v352, %v376
      %v380 = vmax.f32 %v353, %v377
      %v381 = vperm.slane %v239, 6
      %v382 = vperm.slane %v240, 6
      %v383 = vperm.slane %v241, 6
      %vm384 = vcmp.eq.s32.totalorder %v381, 1
      %vm385 = vcmp.eq.s32.totalorder %v382, 1
      %vm386 = vcmp.eq.s32.totalorder %v383, 1
      %387 = vrot.lane.b32.xlu0 %v233, 111
      %v388 = vpop.permute.xlu0 %387
      %389 = vrot.lane.b32.xlu0 %v234, 111
      %v390 = vpop.permute.xlu0 %389
      %391 = vrot.lane.b32.xlu0 %v235, 111
      %v392 = vpop.permute.xlu0 %391
      %393 = vrot.lane.b32.xlu0 0.0, 111
      %v394 = vpop.permute.xlu0 %393
      %vm395 = vcmask 908288
      %v396 = vsel %vm395, %v388, %v390
      %v397 = vsel %vm395, %v390, %v392
      %v398 = vsel %vm395, %v392, %v394
      %v402 = vsel %vm384, %v396, -inf
      %v403 = vsel %vm385, %v397, -inf
      %v404 = vsel %vm386, %v398, -inf
      %v405 = vmax.f32 %v378, %v402
      %v406 = vmax.f32 %v379, %v403
      %v407 = vmax.f32 %v380, %v404
      %v408 = vperm.slane %v239, 7
      %v409 = vperm.slane %v240, 7
      %v410 = vperm.slane %v241, 7
      %vm411 = vcmp.eq.s32.totalorder %v408, 1
      %vm412 = vcmp.eq.s32.totalorder %v409, 1
      %vm413 = vcmp.eq.s32.totalorder %v410, 1
      %414 = vrot.lane.b32.xlu0 %v233, 110
      %v415 = vpop.permute.xlu0 %414
      %416 = vrot.lane.b32.xlu0 %v234, 110
      %v417 = vpop.permute.xlu0 %416
      %418 = vrot.lane.b32.xlu0 %v235, 110
      %v419 = vpop.permute.xlu0 %418
      %420 = vrot.lane.b32.xlu0 0.0, 110
      %v421 = vpop.permute.xlu0 %420
      %vm422 = vcmask 900096
      %v423 = vsel %vm422, %v415, %v417
      %v424 = vsel %vm422, %v417, %v419
      %v425 = vsel %vm422, %v419, %v421
      %v429 = vsel %vm411, %v423, -inf
      %v430 = vsel %vm412, %v424, -inf
      %v431 = vsel %vm413, %v425, -inf
      %v432 = vmax.f32 %v405, %v429
      %v433 = vmax.f32 %v406, %v430
      %v434 = vmax.f32 %v407, %v431
      %v435 = vsel %vm228, 1, 0
      %v436 = vsel %vm229, 1, 0
      %v437 = vsel %vm230, 1, 0
      %v438 = vperm.slane %v435, 0
      %v439 = vperm.slane %v436, 0
      %v440 = vperm.slane %v437, 0
      %vm441 = vcmp.eq.s32.totalorder %v438, 1
      %vm442 = vcmp.eq.s32.totalorder %v439, 1
      %vm443 = vcmp.eq.s32.totalorder %v440, 1
      %444 = vrot.lane.b32.xlu0 %v233, 109
      %v445 = vpop.permute.xlu0 %444
      %446 = vrot.lane.b32.xlu0 %v234, 109
      %v447 = vpop.permute.xlu0 %446
      %448 = vrot.lane.b32.xlu0 %v235, 109
      %v449 = vpop.permute.xlu0 %448
      %450 = vrot.lane.b32.xlu0 0.0, 109
      %v451 = vpop.permute.xlu0 %450
      %vm452 = vcmask 891904
      %v453 = vsel %vm452, %v445, %v447
      %v454 = vsel %vm452, %v447, %v449
      %v455 = vsel %vm452, %v449, %v451
      %v459 = vsel %vm441, %v453, -inf
      %v460 = vsel %vm442, %v454, -inf
      %v461 = vsel %vm443, %v455, -inf
      %v462 = vmax.f32 %v432, %v459
      %v463 = vmax.f32 %v433, %v460
      %v464 = vmax.f32 %v434, %v461
      %v465 = vsel %vm368, %v367, %v361
      %468 = vrot.lane.b32.xlu0 0.0, 126
      %v469 = vpop.permute.xlu0 %468
      %470 = vrot.lane.b32.xlu0 %v233, 126
      %v471 = vpop.permute.xlu0 %470
      %472 = vrot.lane.b32.xlu0 %v234, 126
      %v473 = vpop.permute.xlu0 %472
      %474 = vrot.lane.b32.xlu0 %v235, 126
      %v475 = vpop.permute.xlu0 %474
      %vm476 = vcmask 1031168
      %v477 = vsel %vm476, %v469, %v471
      %v478 = vsel %vm476, %v471, %v473
      %v479 = vsel %vm476, %v473, %v475
      %v484 = vsel %vm422, %v421, %v415
      %489 = vrot.lane.b32.xlu0 %v233, 108
      %v490 = vpop.permute.xlu0 %489
      %491 = vrot.lane.b32.xlu0 %v234, 108
      %v492 = vpop.permute.xlu0 %491
      %493 = vrot.lane.b32.xlu0 %v235, 108
      %v494 = vpop.permute.xlu0 %493
      %495 = vrot.lane.b32.xlu0 0.0, 108
      %v496 = vpop.permute.xlu0 %495
      %vm497 = vcmask 883712
      %v498 = vsel %vm497, %v490, %v492
      %v499 = vsel %vm497, %v492, %v494
      %v500 = vsel %vm497, %v494, %v496
      %505 = vrot.lane.b32.xlu0 %v233, 92
      %v506 = vpop.permute.xlu0 %505
      %507 = vrot.lane.b32.xlu0 %v234, 92
      %v508 = vpop.permute.xlu0 %507
      %509 = vrot.lane.b32.xlu0 %v235, 92
      %v510 = vpop.permute.xlu0 %509
      %511 = vrot.lane.b32.xlu0 0.0, 92
      %v512 = vpop.permute.xlu0 %511
      %vm513 = vcmask 752640
      %v514 = vsel %vm513, %v506, %v508
      %v515 = vsel %vm513, %v508, %v510
      %v516 = vsel %vm513, %v510, %v512
      %521 = vrot.lane.b32.xlu0 %v233, 91
      %v522 = vpop.permute.xlu0 %521
      %523 = vrot.lane.b32.xlu0 %v234, 91
      %v524 = vpop.permute.xlu0 %523
      %525 = vrot.lane.b32.xlu0 %v235, 91
      %v526 = vpop.permute.xlu0 %525
      %527 = vrot.lane.b32.xlu0 0.0, 91
      %v528 = vpop.permute.xlu0 %527
      %vm529 = vcmask 744448
      %v530 = vsel %vm529, %v522, %v524
      %v531 = vsel %vm529, %v524, %v526
      %v532 = vsel %vm529, %v526, %v528
      %537 = vrot.lane.b32.xlu0 %v233, 90
      %v538 = vpop.permute.xlu0 %537
      %539 = vrot.lane.b32.xlu0 %v234, 90
      %v540 = vpop.permute.xlu0 %539
      %541 = vrot.lane.b32.xlu0 %v235, 90
      %v542 = vpop.permute.xlu0 %541
      %543 = vrot.lane.b32.xlu0 0.0, 90
      %v544 = vpop.permute.xlu0 %543
      %vm545 = vcmask 736256
      %v546 = vsel %vm545, %v538, %v540
      %v547 = vsel %vm545, %v540, %v542
      %v548 = vsel %vm545, %v542, %v544
      %556 = vrot.lane.b32.xlu0 %v462, 109
      %v557 = vpop.permute.xlu0 %556
      %558 = vrot.lane.b32.xlu0 %v463, 109
      %v559 = vpop.permute.xlu0 %558
      %560 = vrot.lane.b32.xlu0 %v464, 109
      %v561 = vpop.permute.xlu0 %560
      %v562 = vsel %vm452, %v557, %v559
      %v563 = vsel %vm452, %v559, %v561
      %v568 = vpack.c.bf16 %v233, 0.0
      %v569 = vpack.c.bf16 %v235, %v234
      %v570 = vpack.c.bf16 %v369, %v465
      %v571 = vpack.c.bf16 %v365, %v370
      %v572 = vpack.c.bf16 %v478, %v477
      %v573 = vpack.c.bf16 %v475, %v479
      %v574 = vpack.c.bf16 %v423, %v484
      %v575 = vpack.c.bf16 %v419, %v424
      %v576 = vpack.c.bf16 %v453, %v445
      %v577 = vpack.c.bf16 %v449, %v454
      %v578 = vpack.c.bf16 %v498, %v490
      %v579 = vpack.c.bf16 %v500, %v499
      %v580 = vpack.c.bf16 %v514, %v506
      %v581 = vpack.c.bf16 %v516, %v515
      %v582 = vpack.c.bf16 %v530, %v522
      %v583 = vpack.c.bf16 %v532, %v531
      %v584 = vpack.c.bf16 %v546, %v538
      %v585 = vpack.c.bf16 %v548, %v547
      %v586 = vpack.c.bf16 %v562, %v557
      %v587 = vpack.c.bf16 %v561, %v563
      %608 = vrot.lane.b32.xlu0 %v568, 19
      %v609 = vpop.permute.xlu0 %608
      %610 = vrot.lane.b32.xlu0 %v569, 19
      %v611 = vpop.permute.xlu0 %610
      %612 = vrot.lane.b32.xlu0 %v570, 19
      %v613 = vpop.permute.xlu0 %612
      %614 = vrot.lane.b32.xlu0 %v571, 19
      %v615 = vpop.permute.xlu0 %614
      %616 = vrot.lane.b32.xlu0 %v572, 19
      %v617 = vpop.permute.xlu0 %616
      %618 = vrot.lane.b32.xlu0 %v573, 19
      %v619 = vpop.permute.xlu0 %618
      %620 = vrot.lane.b32.xlu0 %v574, 19
      %v621 = vpop.permute.xlu0 %620
      %622 = vrot.lane.b32.xlu0 %v575, 19
      %v623 = vpop.permute.xlu0 %622
      %624 = vrot.lane.b32.xlu0 %v576, 19
      %v625 = vpop.permute.xlu0 %624
      %626 = vrot.lane.b32.xlu0 %v577, 19
      %v627 = vpop.permute.xlu0 %626
      %628 = vrot.lane.b32.xlu0 %v578, 19
      %v629 = vpop.permute.xlu0 %628
      %630 = vrot.lane.b32.xlu0 %v579, 19
      %v631 = vpop.permute.xlu0 %630
      %632 = vrot.lane.b32.xlu0 %v580, 19
      %v633 = vpop.permute.xlu0 %632
      %634 = vrot.lane.b32.xlu0 %v581, 19
      %v635 = vpop.permute.xlu0 %634
      %636 = vrot.lane.b32.xlu0 %v582, 19
      %v637 = vpop.permute.xlu0 %636
      %638 = vrot.lane.b32.xlu0 %v583, 19
      %v639 = vpop.permute.xlu0 %638
      %640 = vrot.lane.b32.xlu0 %v584, 19
      %v641 = vpop.permute.xlu0 %640
      %642 = vrot.lane.b32.xlu0 %v585, 19
      %v643 = vpop.permute.xlu0 %642
      %644 = vrot.lane.b32.xlu0 %v586, 19
      %v645 = vpop.permute.xlu0 %644
      %646 = vrot.lane.b32.xlu0 %v587, 19
      %v647 = vpop.permute.xlu0 %646
      %v648 = vrot.slane %v609, 4
      %v649 = vrot.slane %v611, 4
      %v650 = vrot.slane %v613, 4
      %v651 = vrot.slane %v615, 4
      %v652 = vrot.slane %v617, 4
      %v653 = vrot.slane %v619, 4
      %v654 = vrot.slane %v621, 4
      %v655 = vrot.slane %v623, 4
      %v656 = vrot.slane %v625, 4
      %v657 = vrot.slane %v627, 4
      %v658 = vrot.slane %v629, 4
      %v659 = vrot.slane %v631, 4
      %v660 = vrot.slane %v633, 4
      %v661 = vrot.slane %v635, 4
      %v662 = vrot.slane %v637, 4
      %v663 = vrot.slane %v639, 4
      %v664 = vrot.slane %v641, 4
      %v665 = vrot.slane %v643, 4
      %v666 = vrot.slane %v645, 4
      %v667 = vrot.slane %v647, 4
      %vm668 = vcmask 1043456
      %v669 = vsel %vm668, %v648, %v649
      %vm670 = vcmask 154624
      %v671 = vsel %vm670, %v609, %v669
      %v672 = vsel %vm670, %v611, %v649
      %v673 = vsel %vm668, %v650, %v651
      %v674 = vsel %vm670, %v613, %v673
      %v675 = vsel %vm670, %v615, %v651
      %v676 = vsel %vm668, %v652, %v653
      %v677 = vsel %vm670, %v617, %v676
      %v678 = vsel %vm670, %v619, %v653
      %v679 = vsel %vm668, %v654, %v655
      %v680 = vsel %vm670, %v621, %v679
      %v681 = vsel %vm670, %v623, %v655
      %v682 = vsel %vm668, %v656, %v657
      %v683 = vsel %vm670, %v625, %v682
      %v684 = vsel %vm670, %v627, %v657
      %v685 = vsel %vm668, %v658, %v659
      %v686 = vsel %vm670, %v629, %v685
      %v687 = vsel %vm670, %v631, %v659
      %v688 = vsel %vm668, %v660, %v661
      %v689 = vsel %vm670, %v633, %v688
      %v690 = vsel %vm670, %v635, %v661
      %v691 = vsel %vm668, %v662, %v663
      %v692 = vsel %vm670, %v637, %v691
      %v693 = vsel %vm670, %v639, %v663
      %v694 = vsel %vm668, %v664, %v665
      %v695 = vsel %vm670, %v641, %v694
      %v696 = vsel %vm670, %v643, %v665
      %v697 = vsel %vm668, %v666, %v667
      %v698 = vsel %vm670, %v645, %v697
      %v699 = vsel %vm670, %v647, %v667
      %720 = vst [vmem:[#allocation2] sm:$0xff] %v671
      %721 = vst [vmem:[#allocation2 + $0x8] sm:$0xf] %v672
      %722 = vst [vmem:[#allocation2 + $0xc] sm:$0xff] %v674
      %723 = vst [vmem:[#allocation2 + $0x14] sm:$0xf] %v675
      %724 = vst [vmem:[#allocation2 + $0x18] sm:$0xff] %v677
      %725 = vst [vmem:[#allocation2 + $0x20] sm:$0xf] %v678
      %726 = vst [vmem:[#allocation2 + $0x24] sm:$0xff] %v680
      %727 = vst [vmem:[#allocation2 + $0x2c] sm:$0xf] %v681
      %728 = vst [vmem:[#allocation2 + $0x30] sm:$0xff] %v683
      %729 = vst [vmem:[#allocation2 + $0x38] sm:$0xf] %v684
      %730 = vst [vmem:[#allocation2 + $0x3c] sm:$0xff] %v686
      %731 = vst [vmem:[#allocation2 + $0x44] sm:$0xf] %v687
      %732 = vst [vmem:[#allocation2 + $0x48] sm:$0xff] %v689
      %733 = vst [vmem:[#allocation2 + $0x50] sm:$0xf] %v690
      %734 = vst [vmem:[#allocation2 + $0x54] sm:$0xff] %v692
      %735 = vst [vmem:[#allocation2 + $0x5c] sm:$0xf] %v693
      %736 = vst [vmem:[#allocation2 + $0x60] sm:$0xff] %v695
      %737 = vst [vmem:[#allocation2 + $0x68] sm:$0xf] %v696
      %738 = vst [vmem:[#allocation2 + $0x6c] sm:$0xff] %v698
      %739 = vst [vmem:[#allocation2 + $0x74] sm:$0xf] %v699
      %743 = vrot.lane.b32.xlu0 %v236, 19
      %v744 = vpop.permute.xlu0 %743
      %745 = vrot.lane.b32.xlu0 %v237, 19
      %v746 = vpop.permute.xlu0 %745
      %747 = vrot.lane.b32.xlu0 %v238, 19
      %v748 = vpop.permute.xlu0 %747
      %v749 = vsel %vm260, %v253, %v744
      %v750 = vsel %vm260, %v744, %v746
      %v751 = vsel %vm260, %v746, %v748
      %v755 = vsel %vm245, %v749, -inf
      %v756 = vsel %vm246, %v750, -inf
      %v757 = vsel %vm247, %v751, -inf
      %v758 = vmax.f32 %v236, %v755
      %v759 = vmax.f32 %v237, %v756
      %v760 = vmax.f32 %v238, %v757
      %761 = vrot.lane.b32.xlu0 %v236, 18
      %v762 = vpop.permute.xlu0 %761
      %763 = vrot.lane.b32.xlu0 %v237, 18
      %v764 = vpop.permute.xlu0 %763
      %765 = vrot.lane.b32.xlu0 %v238, 18
      %v766 = vpop.permute.xlu0 %765
      %v767 = vsel %vm287, %v280, %v762
      %v768 = vsel %vm287, %v762, %v764
      %v769 = vsel %vm287, %v764, %v766
      %v773 = vsel %vm276, %v767, -inf
      %v774 = vsel %vm277, %v768, -inf
      %v775 = vsel %vm278, %v769, -inf
      %v776 = vmax.f32 %v758, %v773
      %v777 = vmax.f32 %v759, %v774
      %v778 = vmax.f32 %v760, %v775
      %779 = vrot.lane.b32.xlu0 %v236, 17
      %v780 = vpop.permute.xlu0 %779
      %781 = vrot.lane.b32.xlu0 %v237, 17
      %v782 = vpop.permute.xlu0 %781
      %783 = vrot.lane.b32.xlu0 %v238, 17
      %v784 = vpop.permute.xlu0 %783
      %v785 = vsel %vm314, %v307, %v780
      %v786 = vsel %vm314, %v780, %v782
      %v787 = vsel %vm314, %v782, %v784
      %v791 = vsel %vm303, %v785, -inf
      %v792 = vsel %vm304, %v786, -inf
      %v793 = vsel %vm305, %v787, -inf
      %v794 = vmax.f32 %v776, %v791
      %v795 = vmax.f32 %v777, %v792
      %v796 = vmax.f32 %v778, %v793
      %797 = vrot.lane.b32.xlu0 %v236, 1
      %v798 = vpop.permute.xlu0 %797
      %799 = vrot.lane.b32.xlu0 %v237, 1
      %v800 = vpop.permute.xlu0 %799
      %801 = vrot.lane.b32.xlu0 %v238, 1
      %v802 = vpop.permute.xlu0 %801
      %v803 = vsel %vm341, %v334, %v798
      %v804 = vsel %vm341, %v798, %v800
      %v805 = vsel %vm341, %v800, %v802
      %v809 = vsel %vm330, %v803, -inf
      %v810 = vsel %vm331, %v804, -inf
      %v811 = vsel %vm332, %v805, -inf
      %v812 = vmax.f32 %v794, %v809
      %v813 = vmax.f32 %v795, %v810
      %v814 = vmax.f32 %v796, %v811
      %815 = vrot.lane.b32.xlu0 %v236, 127
      %v816 = vpop.permute.xlu0 %815
      %817 = vrot.lane.b32.xlu0 %v237, 127
      %v818 = vpop.permute.xlu0 %817
      %819 = vrot.lane.b32.xlu0 %v238, 127
      %v820 = vpop.permute.xlu0 %819
      %v821 = vsel %vm368, %v816, %v818
      %v822 = vsel %vm368, %v818, %v820
      %v823 = vsel %vm368, %v820, %v367
      %v827 = vsel %vm357, %v821, -inf
      %v828 = vsel %vm358, %v822, -inf
      %v829 = vsel %vm359, %v823, -inf
      %v830 = vmax.f32 %v812, %v827
      %v831 = vmax.f32 %v813, %v828
      %v832 = vmax.f32 %v814, %v829
      %833 = vrot.lane.b32.xlu0 %v236, 111
      %v834 = vpop.permute.xlu0 %833
      %835 = vrot.lane.b32.xlu0 %v237, 111
      %v836 = vpop.permute.xlu0 %835
      %837 = vrot.lane.b32.xlu0 %v238, 111
      %v838 = vpop.permute.xlu0 %837
      %v839 = vsel %vm395, %v834, %v836
      %v840 = vsel %vm395, %v836, %v838
      %v841 = vsel %vm395, %v838, %v394
      %v845 = vsel %vm384, %v839, -inf
      %v846 = vsel %vm385, %v840, -inf
      %v847 = vsel %vm386, %v841, -inf
      %v848 = vmax.f32 %v830, %v845
      %v849 = vmax.f32 %v831, %v846
      %v850 = vmax.f32 %v832, %v847
      %851 = vrot.lane.b32.xlu0 %v236, 110
      %v852 = vpop.permute.xlu0 %851
      %853 = vrot.lane.b32.xlu0 %v237, 110
      %v854 = vpop.permute.xlu0 %853
      %855 = vrot.lane.b32.xlu0 %v238, 110
      %v856 = vpop.permute.xlu0 %855
      %v857 = vsel %vm422, %v852, %v854
      %v858 = vsel %vm422, %v854, %v856
      %v859 = vsel %vm422, %v856, %v421
      %v863 = vsel %vm411, %v857, -inf
      %v864 = vsel %vm412, %v858, -inf
      %v865 = vsel %vm413, %v859, -inf
      %v866 = vmax.f32 %v848, %v863
      %v867 = vmax.f32 %v849, %v864
      %v868 = vmax.f32 %v850, %v865
      %869 = vrot.lane.b32.xlu0 %v236, 109
      %v870 = vpop.permute.xlu0 %869
      %871 = vrot.lane.b32.xlu0 %v237, 109
      %v872 = vpop.permute.xlu0 %871
      %873 = vrot.lane.b32.xlu0 %v238, 109
      %v874 = vpop.permute.xlu0 %873
      %v875 = vsel %vm452, %v870, %v872
      %v876 = vsel %vm452, %v872, %v874
      %v877 = vsel %vm452, %v874, %v451
      %v881 = vsel %vm441, %v875, -inf
      %v882 = vsel %vm442, %v876, -inf
      %v883 = vsel %vm443, %v877, -inf
      %v884 = vmax.f32 %v866, %v881
      %v885 = vmax.f32 %v867, %v882
      %v886 = vmax.f32 %v868, %v883
      %v887 = vsel %vm368, %v367, %v816
      %890 = vrot.lane.b32.xlu0 %v236, 126
      %v891 = vpop.permute.xlu0 %890
      %892 = vrot.lane.b32.xlu0 %v237, 126
      %v893 = vpop.permute.xlu0 %892
      %894 = vrot.lane.b32.xlu0 %v238, 126
      %v895 = vpop.permute.xlu0 %894
      %v896 = vsel %vm476, %v469, %v891
      %v897 = vsel %vm476, %v891, %v893
      %v898 = vsel %vm476, %v893, %v895
      %v903 = vsel %vm422, %v421, %v852
      %908 = vrot.lane.b32.xlu0 %v236, 108
      %v909 = vpop.permute.xlu0 %908
      %910 = vrot.lane.b32.xlu0 %v237, 108
      %v911 = vpop.permute.xlu0 %910
      %912 = vrot.lane.b32.xlu0 %v238, 108
      %v913 = vpop.permute.xlu0 %912
      %v914 = vsel %vm497, %v909, %v911
      %v915 = vsel %vm497, %v911, %v913
      %v916 = vsel %vm497, %v913, %v496
      %921 = vrot.lane.b32.xlu0 %v236, 92
      %v922 = vpop.permute.xlu0 %921
      %923 = vrot.lane.b32.xlu0 %v237, 92
      %v924 = vpop.permute.xlu0 %923
      %925 = vrot.lane.b32.xlu0 %v238, 92
      %v926 = vpop.permute.xlu0 %925
      %v927 = vsel %vm513, %v922, %v924
      %v928 = vsel %vm513, %v924, %v926
      %v929 = vsel %vm513, %v926, %v512
      %934 = vrot.lane.b32.xlu0 %v236, 91
      %v935 = vpop.permute.xlu0 %934
      %936 = vrot.lane.b32.xlu0 %v237, 91
      %v937 = vpop.permute.xlu0 %936
      %938 = vrot.lane.b32.xlu0 %v238, 91
      %v939 = vpop.permute.xlu0 %938
      %v940 = vsel %vm529, %v935, %v937
      %v941 = vsel %vm529, %v937, %v939
      %v942 = vsel %vm529, %v939, %v528
      %947 = vrot.lane.b32.xlu0 %v236, 90
      %v948 = vpop.permute.xlu0 %947
      %949 = vrot.lane.b32.xlu0 %v237, 90
      %v950 = vpop.permute.xlu0 %949
      %951 = vrot.lane.b32.xlu0 %v238, 90
      %v952 = vpop.permute.xlu0 %951
      %v953 = vsel %vm545, %v948, %v950
      %v954 = vsel %vm545, %v950, %v952
      %v955 = vsel %vm545, %v952, %v544
      %963 = vrot.lane.b32.xlu0 %v884, 109
      %v964 = vpop.permute.xlu0 %963
      %965 = vrot.lane.b32.xlu0 %v885, 109
      %v966 = vpop.permute.xlu0 %965
      %967 = vrot.lane.b32.xlu0 %v886, 109
      %v968 = vpop.permute.xlu0 %967
      %v969 = vsel %vm452, %v964, %v966
      %v970 = vsel %vm452, %v966, %v968
      %v975 = vpack.c.bf16 %v236, 0.0
      %v976 = vpack.c.bf16 %v238, %v237
      %v977 = vpack.c.bf16 %v821, %v887
      %v978 = vpack.c.bf16 %v820, %v822
      %v979 = vpack.c.bf16 %v897, %v896
      %v980 = vpack.c.bf16 %v895, %v898
      %v981 = vpack.c.bf16 %v857, %v903
      %v982 = vpack.c.bf16 %v856, %v858
      %v983 = vpack.c.bf16 %v875, %v870
      %v984 = vpack.c.bf16 %v874, %v876
      %v985 = vpack.c.bf16 %v914, %v909
      %v986 = vpack.c.bf16 %v916, %v915
      %v987 = vpack.c.bf16 %v927, %v922
      %v988 = vpack.c.bf16 %v929, %v928
      %v989 = vpack.c.bf16 %v940, %v935
      %v990 = vpack.c.bf16 %v942, %v941
      %v991 = vpack.c.bf16 %v953, %v948
      %v992 = vpack.c.bf16 %v955, %v954
      %v993 = vpack.c.bf16 %v969, %v964
      %v994 = vpack.c.bf16 %v968, %v970
      %1015 = vrot.lane.b32.xlu0 %v975, 19
      %v1016 = vpop.permute.xlu0 %1015
      %1017 = vrot.lane.b32.xlu0 %v976, 19
      %v1018 = vpop.permute.xlu0 %1017
      %1019 = vrot.lane.b32.xlu0 %v977, 19
      %v1020 = vpop.permute.xlu0 %1019
      %1021 = vrot.lane.b32.xlu0 %v978, 19
      %v1022 = vpop.permute.xlu0 %1021
      %1023 = vrot.lane.b32.xlu0 %v979, 19
      %v1024 = vpop.permute.xlu0 %1023
      %1025 = vrot.lane.b32.xlu0 %v980, 19
      %v1026 = vpop.permute.xlu0 %1025
      %1027 = vrot.lane.b32.xlu0 %v981, 19
      %v1028 = vpop.permute.xlu0 %1027
      %1029 = vrot.lane.b32.xlu0 %v982, 19
      %v1030 = vpop.permute.xlu0 %1029
      %1031 = vrot.lane.b32.xlu0 %v983, 19
      %v1032 = vpop.permute.xlu0 %1031
      %1033 = vrot.lane.b32.xlu0 %v984, 19
      %v1034 = vpop.permute.xlu0 %1033
      %1035 = vrot.lane.b32.xlu0 %v985, 19
      %v1036 = vpop.permute.xlu0 %1035
      %1037 = vrot.lane.b32.xlu0 %v986, 19
      %v1038 = vpop.permute.xlu0 %1037
      %1039 = vrot.lane.b32.xlu0 %v987, 19
      %v1040 = vpop.permute.xlu0 %1039
      %1041 = vrot.lane.b32.xlu0 %v988, 19
      %v1042 = vpop.permute.xlu0 %1041
      %1043 = vrot.lane.b32.xlu0 %v989, 19
      %v1044 = vpop.permute.xlu0 %1043
      %1045 = vrot.lane.b32.xlu0 %v990, 19
      %v1046 = vpop.permute.xlu0 %1045
      %1047 = vrot.lane.b32.xlu0 %v991, 19
      %v1048 = vpop.permute.xlu0 %1047
      %1049 = vrot.lane.b32.xlu0 %v992, 19
      %v1050 = vpop.permute.xlu0 %1049
      %1051 = vrot.lane.b32.xlu0 %v993, 19
      %v1052 = vpop.permute.xlu0 %1051
      %1053 = vrot.lane.b32.xlu0 %v994, 19
      %v1054 = vpop.permute.xlu0 %1053
      %v1055 = vrot.slane %v1016, 4
      %v1056 = vrot.slane %v1018, 4
      %v1057 = vrot.slane %v1020, 4
      %v1058 = vrot.slane %v1022, 4
      %v1059 = vrot.slane %v1024, 4
      %v1060 = vrot.slane %v1026, 4
      %v1061 = vrot.slane %v1028, 4
      %v1062 = vrot.slane %v1030, 4
      %v1063 = vrot.slane %v1032, 4
      %v1064 = vrot.slane %v1034, 4
      %v1065 = vrot.slane %v1036, 4
      %v1066 = vrot.slane %v1038, 4
      %v1067 = vrot.slane %v1040, 4
      %v1068 = vrot.slane %v1042, 4
      %v1069 = vrot.slane %v1044, 4
      %v1070 = vrot.slane %v1046, 4
      %v1071 = vrot.slane %v1048, 4
      %v1072 = vrot.slane %v1050, 4
      %v1073 = vrot.slane %v1052, 4
      %v1074 = vrot.slane %v1054, 4
      %v1075 = vsel %vm668, %v1055, %v1056
      %v1076 = vsel %vm670, %v1016, %v1075
      %v1077 = vsel %vm670, %v1018, %v1056
      %v1078 = vsel %vm668, %v1057, %v1058
      %v1079 = vsel %vm670, %v1020, %v1078
      %v1080 = vsel %vm670, %v1022, %v1058
      %v1081 = vsel %vm668, %v1059, %v1060
      %v1082 = vsel %vm670, %v1024, %v1081
      %v1083 = vsel %vm670, %v1026, %v1060
      %v1084 = vsel %vm668, %v1061, %v1062
      %v1085 = vsel %vm670, %v1028, %v1084
      %v1086 = vsel %vm670, %v1030, %v1062
      %v1087 = vsel %vm668, %v1063, %v1064
      %v1088 = vsel %vm670, %v1032, %v1087
      %v1089 = vsel %vm670, %v1034, %v1064
      %v1090 = vsel %vm668, %v1065, %v1066
      %v1091 = vsel %vm670, %v1036, %v1090
      %v1092 = vsel %vm670, %v1038, %v1066
      %v1093 = vsel %vm668, %v1067, %v1068
      %v1094 = vsel %vm670, %v1040, %v1093
      %v1095 = vsel %vm670, %v1042, %v1068
      %v1096 = vsel %vm668, %v1069, %v1070
      %v1097 = vsel %vm670, %v1044, %v1096
      %v1098 = vsel %vm670, %v1046, %v1070
      %v1099 = vsel %vm668, %v1071, %v1072
      %v1100 = vsel %vm670, %v1048, %v1099
      %v1101 = vsel %vm670, %v1050, %v1072
      %v1102 = vsel %vm668, %v1073, %v1074
      %v1103 = vsel %vm670, %v1052, %v1102
      %v1104 = vsel %vm670, %v1054, %v1074
      %1125 = vst [vmem:[#allocation2 + $0x78] sm:$0xff] %v1076
      %1126 = vst [vmem:[#allocation2 + $0x80] sm:$0xf] %v1077
      %1127 = vst [vmem:[#allocation2 + $0x84] sm:$0xff] %v1079
      %1128 = vst [vmem:[#allocation2 + $0x8c] sm:$0xf] %v1080
      %1129 = vst [vmem:[#allocation2 + $0x90] sm:$0xff] %v1082
      %1130 = vst [vmem:[#allocation2 + $0x98] sm:$0xf] %v1083
      %1131 = vst [vmem:[#allocation2 + $0x9c] sm:$0xff] %v1085
      %1132 = vst [vmem:[#allocation2 + $0xa4] sm:$0xf] %v1086
      %1133 = vst [vmem:[#allocation2 + $0xa8] sm:$0xff] %v1088
      %1134 = vst [vmem:[#allocation2 + $0xb0] sm:$0xf] %v1089
      %1135 = vst [vmem:[#allocation2 + $0xb4] sm:$0xff] %v1091
      %1136 = vst [vmem:[#allocation2 + $0xbc] sm:$0xf] %v1092
      %1137 = vst [vmem:[#allocation2 + $0xc0] sm:$0xff] %v1094
      %1138 = vst [vmem:[#allocation2 + $0xc8] sm:$0xf] %v1095
      %1139 = vst [vmem:[#allocation2 + $0xcc] sm:$0xff] %v1097
      %1140 = vst [vmem:[#allocation2 + $0xd4] sm:$0xf] %v1098
      %1141 = vst [vmem:[#allocation2 + $0xd8] sm:$0xff] %v1100
      %1142 = vst [vmem:[#allocation2 + $0xe0] sm:$0xf] %v1101
      %1143 = vst [vmem:[#allocation2 + $0xe4] sm:$0xff] %v1103
      %1144 = vst [vmem:[#allocation2 + $0xec] sm:$0xf] %v1104
      %v1145 = vld [vmem:[#allocation2] sm:$0xff]
      %v1146 = vld [vmem:[#allocation2 + $0x8] sm:$0xf]
      %v1147 = vld [vmem:[#allocation2 + $0xc] sm:$0xff]
      %v1148 = vld [vmem:[#allocation2 + $0x14] sm:$0xf]
      %v1149 = vld [vmem:[#allocation2 + $0x18] sm:$0xff]
      %v1150 = vld [vmem:[#allocation2 + $0x20] sm:$0xf]
      %v1151 = vld [vmem:[#allocation2 + $0x24] sm:$0xff]
      %v1152 = vld [vmem:[#allocation2 + $0x2c] sm:$0xf]
      %v1153 = vld [vmem:[#allocation2 + $0x30] sm:$0xff]
      %v1154 = vld [vmem:[#allocation2 + $0x38] sm:$0xf]
      %v1155 = vld [vmem:[#allocation2 + $0x3c] sm:$0xff]
      %v1156 = vld [vmem:[#allocation2 + $0x44] sm:$0xf]
      %v1157 = vld [vmem:[#allocation2 + $0x48] sm:$0xff]
      %v1158 = vld [vmem:[#allocation2 + $0x50] sm:$0xf]
      %v1159 = vld [vmem:[#allocation2 + $0x54] sm:$0xff]
      %v1160 = vld [vmem:[#allocation2 + $0x5c] sm:$0xf]
      %v1161 = vld [vmem:[#allocation2 + $0x60] sm:$0xff]
      %v1162 = vld [vmem:[#allocation2 + $0x68] sm:$0xf]
      %v1163 = vld [vmem:[#allocation2 + $0x6c] sm:$0xff]
      %v1164 = vld [vmem:[#allocation2 + $0x74] sm:$0xf]
      %v1165 = vld [vmem:[#allocation2 + $0x78] sm:$0xff]
      %v1166 = vld [vmem:[#allocation2 + $0x80] sm:$0xf]
      %v1167 = vld [vmem:[#allocation2 + $0x84] sm:$0xff]
      %v1168 = vld [vmem:[#allocation2 + $0x8c] sm:$0xf]
      %v1169 = vld [vmem:[#allocation2 + $0x90] sm:$0xff]
      %v1170 = vld [vmem:[#allocation2 + $0x98] sm:$0xf]
      %v1171 = vld [vmem:[#allocation2 + $0x9c] sm:$0xff]
      %v1172 = vld [vmem:[#allocation2 + $0xa4] sm:$0xf]
      %v1173 = vld [vmem:[#allocation2 + $0xa8] sm:$0xff]
      %v1174 = vld [vmem:[#allocation2 + $0xb0] sm:$0xf]
      %v1175 = vld [vmem:[#allocation2 + $0xb4] sm:$0xff]
      %v1176 = vld [vmem:[#allocation2 + $0xbc] sm:$0xf]
      %v1177 = vld [vmem:[#allocation2 + $0xc0] sm:$0xff]
      %v1178 = vld [vmem:[#allocation2 + $0xc8] sm:$0xf]
      %v1179 = vld [vmem:[#allocation2 + $0xcc] sm:$0xff]
      %v1180 = vld [vmem:[#allocation2 + $0xd4] sm:$0xf]
      %v1181 = vld [vmem:[#allocation2 + $0xd8] sm:$0xff]
      %v1182 = vld [vmem:[#allocation2 + $0xe0] sm:$0xf]
      %v1183 = vld [vmem:[#allocation2 + $0xe4] sm:$0xff]
      %v1184 = vld [vmem:[#allocation2 + $0xec] sm:$0xf]
      %v1186 = vunpack.c.l.b16 %v231
      %v1187 = vunpack.c.h.b16 %v231
      %v1188 = vpack.c.b16 %v1186, %v1186
      %v1189 = vpack.c.b16 %v1187, %v1187
      %v1231 = vunpack.c.l.b16 %v1145
      %v1232 = vunpack.c.h.b16 %v1145
      %v1233 = vunpack.c.l.b16 %v1146
      %v1234 = vunpack.c.l.b16 %v1147
      %v1235 = vunpack.c.h.b16 %v1147
      %v1236 = vunpack.c.l.b16 %v1148
      %v1237 = vunpack.c.l.b16 %v1149
      %v1238 = vunpack.c.h.b16 %v1149
      %v1239 = vunpack.c.l.b16 %v1150
      %v1240 = vunpack.c.l.b16 %v1151
      %v1241 = vunpack.c.h.b16 %v1151
      %v1242 = vunpack.c.l.b16 %v1152
      %v1243 = vunpack.c.l.b16 %v1153
      %v1244 = vunpack.c.h.b16 %v1153
      %v1245 = vunpack.c.l.b16 %v1154
      %v1246 = vunpack.c.l.b16 %v1155
      %v1247 = vunpack.c.h.b16 %v1155
      %v1248 = vunpack.c.l.b16 %v1156
      %v1249 = vunpack.c.l.b16 %v1157
      %v1250 = vunpack.c.h.b16 %v1157
      %v1251 = vunpack.c.l.b16 %v1158
      %v1252 = vunpack.c.l.b16 %v1159
      %v1253 = vunpack.c.h.b16 %v1159
      %v1254 = vunpack.c.l.b16 %v1160
      %v1255 = vunpack.c.l.b16 %v1161
      %v1256 = vunpack.c.h.b16 %v1161
      %v1257 = vunpack.c.l.b16 %v1162
      %v1258 = vunpack.c.l.b16 %v1163
      %v1259 = vunpack.c.h.b16 %v1163
      %v1260 = vunpack.c.l.b16 %v1164
      %v1261 = vunpack.c.l.b16 %v1165
      %v1262 = vunpack.c.h.b16 %v1165
      %v1263 = vunpack.c.l.b16 %v1166
      %v1264 = vunpack.c.l.b16 %v1167
      %v1265 = vunpack.c.h.b16 %v1167
      %v1266 = vunpack.c.l.b16 %v1168
      %v1267 = vunpack.c.l.b16 %v1169
      %v1268 = vunpack.c.h.b16 %v1169
      %v1269 = vunpack.c.l.b16 %v1170
      %v1270 = vunpack.c.l.b16 %v1171
      %v1271 = vunpack.c.h.b16 %v1171
      %v1272 = vunpack.c.l.b16 %v1172
      %v1273 = vunpack.c.l.b16 %v1173
      %v1274 = vunpack.c.h.b16 %v1173
      %v1275 = vunpack.c.l.b16 %v1174
      %v1276 = vunpack.c.l.b16 %v1175
      %v1277 = vunpack.c.h.b16 %v1175
      %v1278 = vunpack.c.l.b16 %v1176
      %v1279 = vunpack.c.l.b16 %v1177
      %v1280 = vunpack.c.h.b16 %v1177
      %v1281 = vunpack.c.l.b16 %v1178
      %v1282 = vunpack.c.l.b16 %v1179
      %v1283 = vunpack.c.h.b16 %v1179
      %v1284 = vunpack.c.l.b16 %v1180
      %v1285 = vunpack.c.l.b16 %v1181
      %v1286 = vunpack.c.h.b16 %v1181
      %v1287 = vunpack.c.l.b16 %v1182
      %v1288 = vunpack.c.l.b16 %v1183
      %v1289 = vunpack.c.h.b16 %v1183
      %v1290 = vunpack.c.l.b16 %v1184
      %v1291 = vpack.c.b16 %v1234, %v1231
      %v1292 = vpack.c.b16 %v1235, %v1232
      %v1293 = vpack.c.b16 %v1236, %v1233
      %v1294 = vpack.c.b16 %v1240, %v1237
      %v1295 = vpack.c.b16 %v1241, %v1238
      %v1296 = vpack.c.b16 %v1242, %v1239
      %v1297 = vpack.c.b16 %v1246, %v1243
      %v1298 = vpack.c.b16 %v1247, %v1244
      %v1299 = vpack.c.b16 %v1248, %v1245
      %v1300 = vpack.c.b16 %v1252, %v1249
      %v1301 = vpack.c.b16 %v1253, %v1250
      %v1302 = vpack.c.b16 %v1254, %v1251
      %v1303 = vpack.c.b16 %v1258, %v1255
      %v1304 = vpack.c.b16 %v1259, %v1256
      %v1305 = vpack.c.b16 %v1260, %v1257
      %v1306 = vpack.c.b16 %v1264, %v1261
      %v1307 = vpack.c.b16 %v1265, %v1262
      %v1308 = vpack.c.b16 %v1266, %v1263
      %v1309 = vpack.c.b16 %v1270, %v1267
      %v1310 = vpack.c.b16 %v1271, %v1268
      %v1311 = vpack.c.b16 %v1272, %v1269
      %v1312 = vpack.c.b16 %v1276, %v1273
      %v1313 = vpack.c.b16 %v1277, %v1274
      %v1314 = vpack.c.b16 %v1278, %v1275
      %v1315 = vpack.c.b16 %v1282, %v1279
      %v1316 = vpack.c.b16 %v1283, %v1280
      %v1317 = vpack.c.b16 %v1284, %v1281
      %v1318 = vpack.c.b16 %v1288, %v1285
      %v1319 = vpack.c.b16 %v1289, %v1286
      %v1320 = vpack.c.b16 %v1290, %v1287
      %vm1351 = vcmask 261120
      %v1353 = vsel %vm1351, %v1189, 0
      %1355 = vmatpush.bf16.msra.mxu0 %v1312
      %1356 = vmatpush.bf16.msra.mxu0 %v1309
      %1357 = vmatpush.bf16.msra.mxu0 %v1306
      %1358 = vmatpush.bf16.msra.mxu0 %v1303
      %1359 = vmatpush.bf16.msra.mxu0 %v1300
      %1360 = vmatpush.bf16.msra.mxu0 %v1297
      %1361 = vmatpush.bf16.msra.mxu0 %v1294
      %1362 = vmatpush.bf16.msra.mxu0 %v1291
      %1363 = vmatmul.bf16.gmra.mxu0 %v1188
      %v1364 = vpop.f32.mrf.mxu0
      %v1365 = vadd.f32 0.0, %v1364
      %v1366 = vpop.f32.mrf.mxu0
      %1367 = vdwg.mxu0
      %1368 = vmatpush.bf16.msra.mxu0 0
      %1369 = vmatpush.bf16.msra.mxu0 0
      %1370 = vmatpush.bf16.msra.mxu0 0
      %1371 = vmatpush.bf16.msra.mxu0 0
      %1372 = vmatpush.bf16.msra.mxu0 0
      %1373 = vmatpush.bf16.msra.mxu0 0
      %1374 = vmatpush.bf16.msra.mxu0 %v1318
      %1375 = vmatpush.bf16.msra.mxu0 %v1315
      %1376 = vmatmul.bf16.gmra.mxu0 %v1353
      %v1377 = vpop.f32.mrf.mxu0
      %v1378 = vadd.f32 %v1365, %v1377
      %v1379 = vpop.f32.mrf.mxu0
      %1380 = vdwg.mxu0
      %1381 = vmatpush.bf16.msra.mxu0 %v1313
      %1382 = vmatpush.bf16.msra.mxu0 %v1310
      %1383 = vmatpush.bf16.msra.mxu0 %v1307
      %1384 = vmatpush.bf16.msra.mxu0 %v1304
      %1385 = vmatpush.bf16.msra.mxu0 %v1301
      %1386 = vmatpush.bf16.msra.mxu0 %v1298
      %1387 = vmatpush.bf16.msra.mxu0 %v1295
      %1388 = vmatpush.bf16.msra.mxu0 %v1292
      %1389 = vmatmul.bf16.gmra.mxu0 %v1188
      %v1390 = vpop.f32.mrf.mxu0
      %v1391 = vadd.f32 0.0, %v1390
      %v1392 = vpop.f32.mrf.mxu0
      %1393 = vdwg.mxu0
      %1394 = vmatpush.bf16.msra.mxu0 0
      %1395 = vmatpush.bf16.msra.mxu0 0
      %1396 = vmatpush.bf16.msra.mxu0 0
      %1397 = vmatpush.bf16.msra.mxu0 0
      %1398 = vmatpush.bf16.msra.mxu0 0
      %1399 = vmatpush.bf16.msra.mxu0 0
      %1400 = vmatpush.bf16.msra.mxu0 %v1319
      %1401 = vmatpush.bf16.msra.mxu0 %v1316
      %1402 = vmatmul.bf16.gmra.mxu0 %v1353
      %v1403 = vpop.f32.mrf.mxu0
      %v1404 = vadd.f32 %v1391, %v1403
      %v1405 = vpop.f32.mrf.mxu0
      %1406 = vdwg.mxu0
      %1407 = vmatpush.bf16.msra.mxu0 %v1314
      %1408 = vmatpush.bf16.msra.mxu0 %v1311
      %1409 = vmatpush.bf16.msra.mxu0 %v1308
      %1410 = vmatpush.bf16.msra.mxu0 %v1305
      %1411 = vmatpush.bf16.msra.mxu0 %v1302
      %1412 = vmatpush.bf16.msra.mxu0 %v1299
      %1413 = vmatpush.bf16.msra.mxu0 %v1296
      %1414 = vmatpush.bf16.msra.mxu0 %v1293
      %1415 = vmatmul.bf16.gmra.mxu0 %v1188
      %v1416 = vpop.f32.mrf.mxu0
      %v1417 = vadd.f32 0.0, %v1416
      %v1418 = vpop.f32.mrf.mxu0
      %1419 = vdwg.mxu0
      %1420 = vmatpush.bf16.msra.mxu0 0
      %1421 = vmatpush.bf16.msra.mxu0 0
      %1422 = vmatpush.bf16.msra.mxu0 0
      %1423 = vmatpush.bf16.msra.mxu0 0
      %1424 = vmatpush.bf16.msra.mxu0 0
      %1425 = vmatpush.bf16.msra.mxu0 0
      %1426 = vmatpush.bf16.msra.mxu0 %v1320
      %1427 = vmatpush.bf16.msra.mxu0 %v1317
      %1428 = vmatmul.bf16.gmra.mxu0 %v1353
      %v1429 = vpop.f32.mrf.mxu0
      %v1430 = vadd.f32 %v1417, %v1429
      %v1431 = vpop.f32.mrf.mxu0
      %1432 = vdwg.mxu0
      %v1433 = vperm.slane %v239, 4
      %v1434 = vperm.slane %v240, 4
      %v1435 = vperm.slane %v241, 4
      %vm1436 = vcmp.eq.s32.totalorder %v1433, 1
      %vm1437 = vcmp.eq.s32.totalorder %v1434, 1
      %vm1438 = vcmp.eq.s32.totalorder %v1435, 1
      %v1439 = vsel %vm1436, %v1378, 0.0
      %v1440 = vsel %vm1437, %v1404, 0.0
      %v1441 = vsel %vm1438, %v1430, 0.0
      %1445 = vrot.lane.b32.xlu0 %v1439, 19
      %v1446 = vpop.permute.xlu0 %1445
      %1447 = vrot.lane.b32.xlu0 %v1440, 19
      %v1448 = vpop.permute.xlu0 %1447
      %1449 = vrot.lane.b32.xlu0 %v1441, 19
      %v1450 = vpop.permute.xlu0 %1449
      %v1451 = vsel %vm260, %v253, %v1446
      %v1452 = vsel %vm260, %v1446, %v1448
      %v1453 = vsel %vm260, %v1448, %v1450
      %v1457 = vsel %vm245, %v1451, -inf
      %v1458 = vsel %vm246, %v1452, -inf
      %v1459 = vsel %vm247, %v1453, -inf
      %v1460 = vmax.f32 %v1439, %v1457
      %v1461 = vmax.f32 %v1440, %v1458
      %v1462 = vmax.f32 %v1441, %v1459
      %1463 = vrot.lane.b32.xlu0 %v1439, 18
      %v1464 = vpop.permute.xlu0 %1463
      %1465 = vrot.lane.b32.xlu0 %v1440, 18
      %v1466 = vpop.permute.xlu0 %1465
      %1467 = vrot.lane.b32.xlu0 %v1441, 18
      %v1468 = vpop.permute.xlu0 %1467
      %v1469 = vsel %vm287, %v280, %v1464
      %v1470 = vsel %vm287, %v1464, %v1466
      %v1471 = vsel %vm287, %v1466, %v1468
      %v1475 = vsel %vm276, %v1469, -inf
      %v1476 = vsel %vm277, %v1470, -inf
      %v1477 = vsel %vm278, %v1471, -inf
      %v1478 = vmax.f32 %v1460, %v1475
      %v1479 = vmax.f32 %v1461, %v1476
      %v1480 = vmax.f32 %v1462, %v1477
      %1481 = vrot.lane.b32.xlu0 %v1439, 17
      %v1482 = vpop.permute.xlu0 %1481
      %1483 = vrot.lane.b32.xlu0 %v1440, 17
      %v1484 = vpop.permute.xlu0 %1483
      %1485 = vrot.lane.b32.xlu0 %v1441, 17
      %v1486 = vpop.permute.xlu0 %1485
      %v1487 = vsel %vm314, %v307, %v1482
      %v1488 = vsel %vm314, %v1482, %v1484
      %v1489 = vsel %vm314, %v1484, %v1486
      %v1493 = vsel %vm303, %v1487, -inf
      %v1494 = vsel %vm304, %v1488, -inf
      %v1495 = vsel %vm305, %v1489, -inf
      %v1496 = vmax.f32 %v1478, %v1493
      %v1497 = vmax.f32 %v1479, %v1494
      %v1498 = vmax.f32 %v1480, %v1495
      %1499 = vrot.lane.b32.xlu0 %v1439, 1
      %v1500 = vpop.permute.xlu0 %1499
      %1501 = vrot.lane.b32.xlu0 %v1440, 1
      %v1502 = vpop.permute.xlu0 %1501
      %1503 = vrot.lane.b32.xlu0 %v1441, 1
      %v1504 = vpop.permute.xlu0 %1503
      %v1505 = vsel %vm341, %v334, %v1500
      %v1506 = vsel %vm341, %v1500, %v1502
      %v1507 = vsel %vm341, %v1502, %v1504
      %v1511 = vsel %vm330, %v1505, -inf
      %v1512 = vsel %vm331, %v1506, -inf
      %v1513 = vsel %vm332, %v1507, -inf
      %v1514 = vmax.f32 %v1496, %v1511
      %v1515 = vmax.f32 %v1497, %v1512
      %v1516 = vmax.f32 %v1498, %v1513
      %1517 = vrot.lane.b32.xlu0 %v1439, 127
      %v1518 = vpop.permute.xlu0 %1517
      %1519 = vrot.lane.b32.xlu0 %v1440, 127
      %v1520 = vpop.permute.xlu0 %1519
      %1521 = vrot.lane.b32.xlu0 %v1441, 127
      %v1522 = vpop.permute.xlu0 %1521
      %v1523 = vsel %vm368, %v1518, %v1520
      %v1524 = vsel %vm368, %v1520, %v1522
      %v1525 = vsel %vm368, %v1522, %v367
      %v1529 = vsel %vm357, %v1523, -inf
      %v1530 = vsel %vm358, %v1524, -inf
      %v1531 = vsel %vm359, %v1525, -inf
      %v1532 = vmax.f32 %v1514, %v1529
      %v1533 = vmax.f32 %v1515, %v1530
      %v1534 = vmax.f32 %v1516, %v1531
      %1535 = vrot.lane.b32.xlu0 %v1439, 111
      %v1536 = vpop.permute.xlu0 %1535
      %1537 = vrot.lane.b32.xlu0 %v1440, 111
      %v1538 = vpop.permute.xlu0 %1537
      %1539 = vrot.lane.b32.xlu0 %v1441, 111
      %v1540 = vpop.permute.xlu0 %1539
      %v1541 = vsel %vm395, %v1536, %v1538
      %v1542 = vsel %vm395, %v1538, %v1540
      %v1543 = vsel %vm395, %v1540, %v394
      %v1547 = vsel %vm384, %v1541, -inf
      %v1548 = vsel %vm385, %v1542, -inf
      %v1549 = vsel %vm386, %v1543, -inf
      %v1550 = vmax.f32 %v1532, %v1547
      %v1551 = vmax.f32 %v1533, %v1548
      %v1552 = vmax.f32 %v1534, %v1549
      %1553 = vrot.lane.b32.xlu0 %v1439, 110
      %v1554 = vpop.permute.xlu0 %1553
      %1555 = vrot.lane.b32.xlu0 %v1440, 110
      %v1556 = vpop.permute.xlu0 %1555
      %1557 = vrot.lane.b32.xlu0 %v1441, 110
      %v1558 = vpop.permute.xlu0 %1557
      %v1559 = vsel %vm422, %v1554, %v1556
      %v1560 = vsel %vm422, %v1556, %v1558
      %v1561 = vsel %vm422, %v1558, %v421
      %v1565 = vsel %vm411, %v1559, -inf
      %v1566 = vsel %vm412, %v1560, -inf
      %v1567 = vsel %vm413, %v1561, -inf
      %v1568 = vmax.f32 %v1550, %v1565
      %v1569 = vmax.f32 %v1551, %v1566
      %v1570 = vmax.f32 %v1552, %v1567
      %1571 = vrot.lane.b32.xlu0 %v1439, 109
      %v1572 = vpop.permute.xlu0 %1571
      %1573 = vrot.lane.b32.xlu0 %v1440, 109
      %v1574 = vpop.permute.xlu0 %1573
      %1575 = vrot.lane.b32.xlu0 %v1441, 109
      %v1576 = vpop.permute.xlu0 %1575
      %v1577 = vsel %vm452, %v1572, %v1574
      %v1578 = vsel %vm452, %v1574, %v1576
      %v1579 = vsel %vm452, %v1576, %v451
      %v1583 = vsel %vm441, %v1577, -inf
      %v1584 = vsel %vm442, %v1578, -inf
      %v1585 = vsel %vm443, %v1579, -inf
      %v1586 = vmax.f32 %v1568, %v1583
      %v1587 = vmax.f32 %v1569, %v1584
      %v1588 = vmax.f32 %v1570, %v1585
      %v1589 = vsel %vm368, %v367, %v1518
      %1592 = vrot.lane.b32.xlu0 %v1439, 126
      %v1593 = vpop.permute.xlu0 %1592
      %1594 = vrot.lane.b32.xlu0 %v1440, 126
      %v1595 = vpop.permute.xlu0 %1594
      %1596 = vrot.lane.b32.xlu0 %v1441, 126
      %v1597 = vpop.permute.xlu0 %1596
      %v1598 = vsel %vm476, %v469, %v1593
      %v1599 = vsel %vm476, %v1593, %v1595
      %v1600 = vsel %vm476, %v1595, %v1597
      %v1605 = vsel %vm422, %v421, %v1554
      %1610 = vrot.lane.b32.xlu0 %v1439, 108
      %v1611 = vpop.permute.xlu0 %1610
      %1612 = vrot.lane.b32.xlu0 %v1440, 108
      %v1613 = vpop.permute.xlu0 %1612
      %1614 = vrot.lane.b32.xlu0 %v1441, 108
      %v1615 = vpop.permute.xlu0 %1614
      %v1616 = vsel %vm497, %v1611, %v1613
      %v1617 = vsel %vm497, %v1613, %v1615
      %v1618 = vsel %vm497, %v1615, %v496
      %1623 = vrot.lane.b32.xlu0 %v1439, 92
      %v1624 = vpop.permute.xlu0 %1623
      %1625 = vrot.lane.b32.xlu0 %v1440, 92
      %v1626 = vpop.permute.xlu0 %1625
      %1627 = vrot.lane.b32.xlu0 %v1441, 92
      %v1628 = vpop.permute.xlu0 %1627
      %v1629 = vsel %vm513, %v1624, %v1626
      %v1630 = vsel %vm513, %v1626, %v1628
      %v1631 = vsel %vm513, %v1628, %v512
      %1636 = vrot.lane.b32.xlu0 %v1439, 91
      %v1637 = vpop.permute.xlu0 %1636
      %1638 = vrot.lane.b32.xlu0 %v1440, 91
      %v1639 = vpop.permute.xlu0 %1638
      %1640 = vrot.lane.b32.xlu0 %v1441, 91
      %v1641 = vpop.permute.xlu0 %1640
      %v1642 = vsel %vm529, %v1637, %v1639
      %v1643 = vsel %vm529, %v1639, %v1641
      %v1644 = vsel %vm529, %v1641, %v528
      %1649 = vrot.lane.b32.xlu0 %v1439, 90
      %v1650 = vpop.permute.xlu0 %1649
      %1651 = vrot.lane.b32.xlu0 %v1440, 90
      %v1652 = vpop.permute.xlu0 %1651
      %1653 = vrot.lane.b32.xlu0 %v1441, 90
      %v1654 = vpop.permute.xlu0 %1653
      %v1655 = vsel %vm545, %v1650, %v1652
      %v1656 = vsel %vm545, %v1652, %v1654
      %v1657 = vsel %vm545, %v1654, %v544
      %1665 = vrot.lane.b32.xlu0 %v1586, 109
      %v1666 = vpop.permute.xlu0 %1665
      %1667 = vrot.lane.b32.xlu0 %v1587, 109
      %v1668 = vpop.permute.xlu0 %1667
      %1669 = vrot.lane.b32.xlu0 %v1588, 109
      %v1670 = vpop.permute.xlu0 %1669
      %v1671 = vsel %vm452, %v1666, %v1668
      %v1672 = vsel %vm452, %v1668, %v1670
      %v1677 = vpack.c.bf16 %v1439, 0.0
      %v1678 = vpack.c.bf16 %v1441, %v1440
      %v1679 = vpack.c.bf16 %v1523, %v1589
      %v1680 = vpack.c.bf16 %v1522, %v1524
      %v1681 = vpack.c.bf16 %v1599, %v1598
      %v1682 = vpack.c.bf16 %v1597, %v1600
      %v1683 = vpack.c.bf16 %v1559, %v1605
      %v1684 = vpack.c.bf16 %v1558, %v1560
      %v1685 = vpack.c.bf16 %v1577, %v1572
      %v1686 = vpack.c.bf16 %v1576, %v1578
      %v1687 = vpack.c.bf16 %v1616, %v1611
      %v1688 = vpack.c.bf16 %v1618, %v1617
      %v1689 = vpack.c.bf16 %v1629, %v1624
      %v1690 = vpack.c.bf16 %v1631, %v1630
      %v1691 = vpack.c.bf16 %v1642, %v1637
      %v1692 = vpack.c.bf16 %v1644, %v1643
      %v1693 = vpack.c.bf16 %v1655, %v1650
      %v1694 = vpack.c.bf16 %v1657, %v1656
      %v1695 = vpack.c.bf16 %v1671, %v1666
      %v1696 = vpack.c.bf16 %v1670, %v1672
      %1717 = vrot.lane.b32.xlu0 %v1677, 19
      %v1718 = vpop.permute.xlu0 %1717
      %1719 = vrot.lane.b32.xlu0 %v1678, 19
      %v1720 = vpop.permute.xlu0 %1719
      %1721 = vrot.lane.b32.xlu0 %v1679, 19
      %v1722 = vpop.permute.xlu0 %1721
      %1723 = vrot.lane.b32.xlu0 %v1680, 19
      %v1724 = vpop.permute.xlu0 %1723
      %1725 = vrot.lane.b32.xlu0 %v1681, 19
      %v1726 = vpop.permute.xlu0 %1725
      %1727 = vrot.lane.b32.xlu0 %v1682, 19
      %v1728 = vpop.permute.xlu0 %1727
      %1729 = vrot.lane.b32.xlu0 %v1683, 19
      %v1730 = vpop.permute.xlu0 %1729
      %1731 = vrot.lane.b32.xlu0 %v1684, 19
      %v1732 = vpop.permute.xlu0 %1731
      %1733 = vrot.lane.b32.xlu0 %v1685, 19
      %v1734 = vpop.permute.xlu0 %1733
      %1735 = vrot.lane.b32.xlu0 %v1686, 19
      %v1736 = vpop.permute.xlu0 %1735
      %1737 = vrot.lane.b32.xlu0 %v1687, 19
      %v1738 = vpop.permute.xlu0 %1737
      %1739 = vrot.lane.b32.xlu0 %v1688, 19
      %v1740 = vpop.permute.xlu0 %1739
      %1741 = vrot.lane.b32.xlu0 %v1689, 19
      %v1742 = vpop.permute.xlu0 %1741
      %1743 = vrot.lane.b32.xlu0 %v1690, 19
      %v1744 = vpop.permute.xlu0 %1743
      %1745 = vrot.lane.b32.xlu0 %v1691, 19
      %v1746 = vpop.permute.xlu0 %1745
      %1747 = vrot.lane.b32.xlu0 %v1692, 19
      %v1748 = vpop.permute.xlu0 %1747
      %1749 = vrot.lane.b32.xlu0 %v1693, 19
      %v1750 = vpop.permute.xlu0 %1749
      %1751 = vrot.lane.b32.xlu0 %v1694, 19
      %v1752 = vpop.permute.xlu0 %1751
      %1753 = vrot.lane.b32.xlu0 %v1695, 19
      %v1754 = vpop.permute.xlu0 %1753
      %1755 = vrot.lane.b32.xlu0 %v1696, 19
      %v1756 = vpop.permute.xlu0 %1755
      %v1757 = vrot.slane %v1718, 4
      %v1758 = vrot.slane %v1720, 4
      %v1759 = vrot.slane %v1722, 4
      %v1760 = vrot.slane %v1724, 4
      %v1761 = vrot.slane %v1726, 4
      %v1762 = vrot.slane %v1728, 4
      %v1763 = vrot.slane %v1730, 4
      %v1764 = vrot.slane %v1732, 4
      %v1765 = vrot.slane %v1734, 4
      %v1766 = vrot.slane %v1736, 4
      %v1767 = vrot.slane %v1738, 4
      %v1768 = vrot.slane %v1740, 4
      %v1769 = vrot.slane %v1742, 4
      %v1770 = vrot.slane %v1744, 4
      %v1771 = vrot.slane %v1746, 4
      %v1772 = vrot.slane %v1748, 4
      %v1773 = vrot.slane %v1750, 4
      %v1774 = vrot.slane %v1752, 4
      %v1775 = vrot.slane %v1754, 4
      %v1776 = vrot.slane %v1756, 4
      %v1777 = vsel %vm668, %v1757, %v1758
      %v1778 = vsel %vm670, %v1718, %v1777
      %v1779 = vsel %vm670, %v1720, %v1758
      %v1780 = vsel %vm668, %v1759, %v1760
      %v1781 = vsel %vm670, %v1722, %v1780
      %v1782 = vsel %vm670, %v1724, %v1760
      %v1783 = vsel %vm668, %v1761, %v1762
      %v1784 = vsel %vm670, %v1726, %v1783
      %v1785 = vsel %vm670, %v1728, %v1762
      %v1786 = vsel %vm668, %v1763, %v1764
      %v1787 = vsel %vm670, %v1730, %v1786
      %v1788 = vsel %vm670, %v1732, %v1764
      %v1789 = vsel %vm668, %v1765, %v1766
      %v1790 = vsel %vm670, %v1734, %v1789
      %v1791 = vsel %vm670, %v1736, %v1766
      %v1792 = vsel %vm668, %v1767, %v1768
      %v1793 = vsel %vm670, %v1738, %v1792
      %v1794 = vsel %vm670, %v1740, %v1768
      %v1795 = vsel %vm668, %v1769, %v1770
      %v1796 = vsel %vm670, %v1742, %v1795
      %v1797 = vsel %vm670, %v1744, %v1770
      %v1798 = vsel %vm668, %v1771, %v1772
      %v1799 = vsel %vm670, %v1746, %v1798
      %v1800 = vsel %vm670, %v1748, %v1772
      %v1801 = vsel %vm668, %v1773, %v1774
      %v1802 = vsel %vm670, %v1750, %v1801
      %v1803 = vsel %vm670, %v1752, %v1774
      %v1804 = vsel %vm668, %v1775, %v1776
      %v1805 = vsel %vm670, %v1754, %v1804
      %v1806 = vsel %vm670, %v1756, %v1776
      %1827 = vst [vmem:[#allocation2 + $0xf0] sm:$0xff] %v1778
      %1828 = vst [vmem:[#allocation2 + $0xf8] sm:$0xf] %v1779
      %1829 = vst [vmem:[#allocation2 + $0xfc] sm:$0xff] %v1781
      %1830 = vst [vmem:[#allocation2 + $0x104] sm:$0xf] %v1782
      %1831 = vst [vmem:[#allocation2 + $0x108] sm:$0xff] %v1784
      %1832 = vst [vmem:[#allocation2 + $0x110] sm:$0xf] %v1785
      %1833 = vst [vmem:[#allocation2 + $0x114] sm:$0xff] %v1787
      %1834 = vst [vmem:[#allocation2 + $0x11c] sm:$0xf] %v1788
      %1835 = vst [vmem:[#allocation2 + $0x120] sm:$0xff] %v1790
      %1836 = vst [vmem:[#allocation2 + $0x128] sm:$0xf] %v1791
      %1837 = vst [vmem:[#allocation2 + $0x12c] sm:$0xff] %v1793
      %1838 = vst [vmem:[#allocation2 + $0x134] sm:$0xf] %v1794
      %1839 = vst [vmem:[#allocation2 + $0x138] sm:$0xff] %v1796
      %1840 = vst [vmem:[#allocation2 + $0x140] sm:$0xf] %v1797
      %1841 = vst [vmem:[#allocation2 + $0x144] sm:$0xff] %v1799
      %1842 = vst [vmem:[#allocation2 + $0x14c] sm:$0xf] %v1800
      %1843 = vst [vmem:[#allocation2 + $0x150] sm:$0xff] %v1802
      %1844 = vst [vmem:[#allocation2 + $0x158] sm:$0xf] %v1803
      %1845 = vst [vmem:[#allocation2 + $0x15c] sm:$0xff] %v1805
      %1846 = vst [vmem:[#allocation2 + $0x164] sm:$0xf] %v1806
      %v1847 = vld [vmem:[#allocation2] sm:$0xff]
      %v1848 = vld [vmem:[#allocation2 + $0x8] sm:$0xf]
      %v1849 = vld [vmem:[#allocation2 + $0xc] sm:$0xff]
      %v1850 = vld [vmem:[#allocation2 + $0x14] sm:$0xf]
      %v1851 = vld [vmem:[#allocation2 + $0x18] sm:$0xff]
      %v1852 = vld [vmem:[#allocation2 + $0x20] sm:$0xf]
      %v1853 = vld [vmem:[#allocation2 + $0x24] sm:$0xff]
      %v1854 = vld [vmem:[#allocation2 + $0x2c] sm:$0xf]
      %v1855 = vld [vmem:[#allocation2 + $0x30] sm:$0xff]
      %v1856 = vld [vmem:[#allocation2 + $0x38] sm:$0xf]
      %v1857 = vld [vmem:[#allocation2 + $0x3c] sm:$0xff]
      %v1858 = vld [vmem:[#allocation2 + $0x44] sm:$0xf]
      %v1859 = vld [vmem:[#allocation2 + $0x48] sm:$0xff]
      %v1860 = vld [vmem:[#allocation2 + $0x50] sm:$0xf]
      %v1861 = vld [vmem:[#allocation2 + $0x54] sm:$0xff]
      %v1862 = vld [vmem:[#allocation2 + $0x5c] sm:$0xf]
      %v1863 = vld [vmem:[#allocation2 + $0x60] sm:$0xff]
      %v1864 = vld [vmem:[#allocation2 + $0x68] sm:$0xf]
      %v1865 = vld [vmem:[#allocation2 + $0x6c] sm:$0xff]
      %v1866 = vld [vmem:[#allocation2 + $0x74] sm:$0xf]
      %v1867 = vld [vmem:[#allocation2 + $0x78] sm:$0xff]
      %v1868 = vld [vmem:[#allocation2 + $0x80] sm:$0xf]
      %v1869 = vld [vmem:[#allocation2 + $0x84] sm:$0xff]
      %v1870 = vld [vmem:[#allocation2 + $0x8c] sm:$0xf]
      %v1871 = vld [vmem:[#allocation2 + $0x90] sm:$0xff]
      %v1872 = vld [vmem:[#allocation2 + $0x98] sm:$0xf]
      %v1873 = vld [vmem:[#allocation2 + $0x9c] sm:$0xff]
      %v1874 = vld [vmem:[#allocation2 + $0xa4] sm:$0xf]
      %v1875 = vld [vmem:[#allocation2 + $0xa8] sm:$0xff]
      %v1876 = vld [vmem:[#allocation2 + $0xb0] sm:$0xf]
      %v1877 = vld [vmem:[#allocation2 + $0xb4] sm:$0xff]
      %v1878 = vld [vmem:[#allocation2 + $0xbc] sm:$0xf]
      %v1879 = vld [vmem:[#allocation2 + $0xc0] sm:$0xff]
      %v1880 = vld [vmem:[#allocation2 + $0xc8] sm:$0xf]
      %v1881 = vld [vmem:[#allocation2 + $0xcc] sm:$0xff]
      %v1882 = vld [vmem:[#allocation2 + $0xd4] sm:$0xf]
      %v1883 = vld [vmem:[#allocation2 + $0xd8] sm:$0xff]
      %v1884 = vld [vmem:[#allocation2 + $0xe0] sm:$0xf]
      %v1885 = vld [vmem:[#allocation2 + $0xe4] sm:$0xff]
      %v1886 = vld [vmem:[#allocation2 + $0xec] sm:$0xf]
      %v1887 = vld [vmem:[#allocation2 + $0xf0] sm:$0xff]
      %v1888 = vld [vmem:[#allocation2 + $0xf8] sm:$0xf]
      %v1889 = vld [vmem:[#allocation2 + $0xfc] sm:$0xff]
      %v1890 = vld [vmem:[#allocation2 + $0x104] sm:$0xf]
      %v1891 = vld [vmem:[#allocation2 + $0x108] sm:$0xff]
      %v1892 = vld [vmem:[#allocation2 + $0x110] sm:$0xf]
      %v1893 = vld [vmem:[#allocation2 + $0x114] sm:$0xff]
      %v1894 = vld [vmem:[#allocation2 + $0x11c] sm:$0xf]
      %v1895 = vld [vmem:[#allocation2 + $0x120] sm:$0xff]
      %v1896 = vld [vmem:[#allocation2 + $0x128] sm:$0xf]
      %v1897 = vld [vmem:[#allocation2 + $0x12c] sm:$0xff]
      %v1898 = vld [vmem:[#allocation2 + $0x134] sm:$0xf]
      %v1899 = vld [vmem:[#allocation2 + $0x138] sm:$0xff]
      %v1900 = vld [vmem:[#allocation2 + $0x140] sm:$0xf]
      %v1901 = vld [vmem:[#allocation2 + $0x144] sm:$0xff]
      %v1902 = vld [vmem:[#allocation2 + $0x14c] sm:$0xf]
      %v1903 = vld [vmem:[#allocation2 + $0x150] sm:$0xff]
      %v1904 = vld [vmem:[#allocation2 + $0x158] sm:$0xf]
      %v1905 = vld [vmem:[#allocation2 + $0x15c] sm:$0xff]
      %v1906 = vld [vmem:[#allocation2 + $0x164] sm:$0xf]
      %v1908 = vunpack.c.l.b16 %v232
      %v1909 = vunpack.c.h.b16 %v232
      %v1910 = vpack.c.b16 %v1908, %v1908
      %v1911 = vpack.c.b16 %v1909, %v1909
      %1912 = vrot.lane.b32.xlu0 %v1189, 96
      %v1913 = vpop.permute.xlu0 %1912
      %1914 = vrot.lane.b32.xlu0 %v1910, 96
      %v1915 = vpop.permute.xlu0 %1914
      %1916 = vrot.lane.b32.xlu0 %v1911, 96
      %v1917 = vpop.permute.xlu0 %1916
      %vm1918 = vcmask 785408
      %v1919 = vsel %vm1918, %v1913, %v1915
      %v1920 = vsel %vm1918, %v1915, %v1917
      %v1982 = vunpack.c.l.b16 %v1847
      %v1983 = vunpack.c.h.b16 %v1847
      %v1984 = vunpack.c.l.b16 %v1848
      %v1985 = vunpack.c.l.b16 %v1849
      %v1986 = vunpack.c.h.b16 %v1849
      %v1987 = vunpack.c.l.b16 %v1850
      %v1988 = vunpack.c.l.b16 %v1851
      %v1989 = vunpack.c.h.b16 %v1851
      %v1990 = vunpack.c.l.b16 %v1852
      %v1991 = vunpack.c.l.b16 %v1853
      %v1992 = vunpack.c.h.b16 %v1853
      %v1993 = vunpack.c.l.b16 %v1854
      %v1994 = vunpack.c.l.b16 %v1855
      %v1995 = vunpack.c.h.b16 %v1855
      %v1996 = vunpack.c.l.b16 %v1856
      %v1997 = vunpack.c.l.b16 %v1857
      %v1998 = vunpack.c.h.b16 %v1857
      %v1999 = vunpack.c.l.b16 %v1858
      %v2000 = vunpack.c.l.b16 %v1859
      %v2001 = vunpack.c.h.b16 %v1859
      %v2002 = vunpack.c.l.b16 %v1860
      %v2003 = vunpack.c.l.b16 %v1861
      %v2004 = vunpack.c.h.b16 %v1861
      %v2005 = vunpack.c.l.b16 %v1862
      %v2006 = vunpack.c.l.b16 %v1863
      %v2007 = vunpack.c.h.b16 %v1863
      %v2008 = vunpack.c.l.b16 %v1864
      %v2009 = vunpack.c.l.b16 %v1865
      %v2010 = vunpack.c.h.b16 %v1865
      %v2011 = vunpack.c.l.b16 %v1866
      %v2012 = vunpack.c.l.b16 %v1867
      %v2013 = vunpack.c.h.b16 %v1867
      %v2014 = vunpack.c.l.b16 %v1868
      %v2015 = vunpack.c.l.b16 %v1869
      %v2016 = vunpack.c.h.b16 %v1869
      %v2017 = vunpack.c.l.b16 %v1870
      %v2018 = vunpack.c.l.b16 %v1871
      %v2019 = vunpack.c.h.b16 %v1871
      %v2020 = vunpack.c.l.b16 %v1872
      %v2021 = vunpack.c.l.b16 %v1873
      %v2022 = vunpack.c.h.b16 %v1873
      %v2023 = vunpack.c.l.b16 %v1874
      %v2024 = vunpack.c.l.b16 %v1875
      %v2025 = vunpack.c.h.b16 %v1875
      %v2026 = vunpack.c.l.b16 %v1876
      %v2027 = vunpack.c.l.b16 %v1877
      %v2028 = vunpack.c.h.b16 %v1877
      %v2029 = vunpack.c.l.b16 %v1878
      %v2030 = vunpack.c.l.b16 %v1879
      %v2031 = vunpack.c.h.b16 %v1879
      %v2032 = vunpack.c.l.b16 %v1880
      %v2033 = vunpack.c.l.b16 %v1881
      %v2034 = vunpack.c.h.b16 %v1881
      %v2035 = vunpack.c.l.b16 %v1882
      %v2036 = vunpack.c.l.b16 %v1883
      %v2037 = vunpack.c.h.b16 %v1883
      %v2038 = vunpack.c.l.b16 %v1884
      %v2039 = vunpack.c.l.b16 %v1885
      %v2040 = vunpack.c.h.b16 %v1885
      %v2041 = vunpack.c.l.b16 %v1886
      %v2042 = vunpack.c.l.b16 %v1887
      %v2043 = vunpack.c.h.b16 %v1887
      %v2044 = vunpack.c.l.b16 %v1888
      %v2045 = vunpack.c.l.b16 %v1889
      %v2046 = vunpack.c.h.b16 %v1889
      %v2047 = vunpack.c.l.b16 %v1890
      %v2048 = vunpack.c.l.b16 %v1891
      %v2049 = vunpack.c.h.b16 %v1891
      %v2050 = vunpack.c.l.b16 %v1892
      %v2051 = vunpack.c.l.b16 %v1893
      %v2052 = vunpack.c.h.b16 %v1893
      %v2053 = vunpack.c.l.b16 %v1894
      %v2054 = vunpack.c.l.b16 %v1895
      %v2055 = vunpack.c.h.b16 %v1895
      %v2056 = vunpack.c.l.b16 %v1896
      %v2057 = vunpack.c.l.b16 %v1897
      %v2058 = vunpack.c.h.b16 %v1897
      %v2059 = vunpack.c.l.b16 %v1898
      %v2060 = vunpack.c.l.b16 %v1899
      %v2061 = vunpack.c.h.b16 %v1899
      %v2062 = vunpack.c.l.b16 %v1900
      %v2063 = vunpack.c.l.b16 %v1901
      %v2064 = vunpack.c.h.b16 %v1901
      %v2065 = vunpack.c.l.b16 %v1902
      %v2066 = vunpack.c.l.b16 %v1903
      %v2067 = vunpack.c.h.b16 %v1903
      %v2068 = vunpack.c.l.b16 %v1904
      %v2069 = vunpack.c.l.b16 %v1905
      %v2070 = vunpack.c.h.b16 %v1905
      %v2071 = vunpack.c.l.b16 %v1906
      %v2072 = vpack.c.b16 %v1985, %v1982
      %v2073 = vpack.c.b16 %v1986, %v1983
      %v2074 = vpack.c.b16 %v1987, %v1984
      %v2075 = vpack.c.b16 %v1991, %v1988
      %v2076 = vpack.c.b16 %v1992, %v1989
      %v2077 = vpack.c.b16 %v1993, %v1990
      %v2078 = vpack.c.b16 %v1997, %v1994
      %v2079 = vpack.c.b16 %v1998, %v1995
      %v2080 = vpack.c.b16 %v1999, %v1996
      %v2081 = vpack.c.b16 %v2003, %v2000
      %v2082 = vpack.c.b16 %v2004, %v2001
      %v2083 = vpack.c.b16 %v2005, %v2002
      %v2084 = vpack.c.b16 %v2009, %v2006
      %v2085 = vpack.c.b16 %v2010, %v2007
      %v2086 = vpack.c.b16 %v2011, %v2008
      %v2087 = vpack.c.b16 %v2015, %v2012
      %v2088 = vpack.c.b16 %v2016, %v2013
      %v2089 = vpack.c.b16 %v2017, %v2014
      %v2090 = vpack.c.b16 %v2021, %v2018
      %v2091 = vpack.c.b16 %v2022, %v2019
      %v2092 = vpack.c.b16 %v2023, %v2020
      %v2093 = vpack.c.b16 %v2027, %v2024
      %v2094 = vpack.c.b16 %v2028, %v2025
      %v2095 = vpack.c.b16 %v2029, %v2026
      %v2096 = vpack.c.b16 %v2033, %v2030
      %v2097 = vpack.c.b16 %v2034, %v2031
      %v2098 = vpack.c.b16 %v2035, %v2032
      %v2099 = vpack.c.b16 %v2039, %v2036
      %v2100 = vpack.c.b16 %v2040, %v2037
      %v2101 = vpack.c.b16 %v2041, %v2038
      %v2102 = vpack.c.b16 %v2045, %v2042
      %v2103 = vpack.c.b16 %v2046, %v2043
      %v2104 = vpack.c.b16 %v2047, %v2044
      %v2105 = vpack.c.b16 %v2051, %v2048
      %v2106 = vpack.c.b16 %v2052, %v2049
      %v2107 = vpack.c.b16 %v2053, %v2050
      %v2108 = vpack.c.b16 %v2057, %v2054
      %v2109 = vpack.c.b16 %v2058, %v2055
      %v2110 = vpack.c.b16 %v2059, %v2056
      %v2111 = vpack.c.b16 %v2063, %v2060
      %v2112 = vpack.c.b16 %v2064, %v2061
      %v2113 = vpack.c.b16 %v2065, %v2062
      %v2114 = vpack.c.b16 %v2069, %v2066
      %v2115 = vpack.c.b16 %v2070, %v2067
      %v2116 = vpack.c.b16 %v2071, %v2068
      %vm2162 = vcmask 916480
      %v2164 = vsel %vm2162, %v1920, 0
      %2166 = vmatpush.bf16.msra.mxu0 %v2093
      %2167 = vmatpush.bf16.msra.mxu0 %v2090
      %2168 = vmatpush.bf16.msra.mxu0 %v2087
      %2169 = vmatpush.bf16.msra.mxu0 %v2084
      %2170 = vmatpush.bf16.msra.mxu0 %v2081
      %2171 = vmatpush.bf16.msra.mxu0 %v2078
      %2172 = vmatpush.bf16.msra.mxu0 %v2075
      %2173 = vmatpush.bf16.msra.mxu0 %v2072
      %2174 = vmatmul.bf16.gmra.mxu0 %v1919
      %v2175 = vpop.f32.mrf.mxu0
      %v2176 = vadd.f32 0.0, %v2175
      %v2177 = vpop.f32.mrf.mxu0
      %2178 = vdwg.mxu0
      %2179 = vmatpush.bf16.msra.mxu0 0
      %2180 = vmatpush.bf16.msra.mxu0 %v2114
      %2181 = vmatpush.bf16.msra.mxu0 %v2111
      %2182 = vmatpush.bf16.msra.mxu0 %v2108
      %2183 = vmatpush.bf16.msra.mxu0 %v2105
      %2184 = vmatpush.bf16.msra.mxu0 %v2102
      %2185 = vmatpush.bf16.msra.mxu0 %v2099
      %2186 = vmatpush.bf16.msra.mxu0 %v2096
      %2187 = vmatmul.bf16.gmra.mxu0 %v2164
      %v2188 = vpop.f32.mrf.mxu0
      %v2189 = vadd.f32 %v2176, %v2188
      %v2190 = vpop.f32.mrf.mxu0
      %2191 = vdwg.mxu0
      %2192 = vmatpush.bf16.msra.mxu0 %v2094
      %2193 = vmatpush.bf16.msra.mxu0 %v2091
      %2194 = vmatpush.bf16.msra.mxu0 %v2088
      %2195 = vmatpush.bf16.msra.mxu0 %v2085
      %2196 = vmatpush.bf16.msra.mxu0 %v2082
      %2197 = vmatpush.bf16.msra.mxu0 %v2079
      %2198 = vmatpush.bf16.msra.mxu0 %v2076
      %2199 = vmatpush.bf16.msra.mxu0 %v2073
      %2200 = vmatmul.bf16.gmra.mxu0 %v1919
      %v2201 = vpop.f32.mrf.mxu0
      %v2202 = vadd.f32 0.0, %v2201
      %v2203 = vpop.f32.mrf.mxu0
      %2204 = vdwg.mxu0
      %2205 = vmatpush.bf16.msra.mxu0 0
      %2206 = vmatpush.bf16.msra.mxu0 %v2115
      %2207 = vmatpush.bf16.msra.mxu0 %v2112
      %2208 = vmatpush.bf16.msra.mxu0 %v2109
      %2209 = vmatpush.bf16.msra.mxu0 %v2106
      %2210 = vmatpush.bf16.msra.mxu0 %v2103
      %2211 = vmatpush.bf16.msra.mxu0 %v2100
      %2212 = vmatpush.bf16.msra.mxu0 %v2097
      %2213 = vmatmul.bf16.gmra.mxu0 %v2164
      %v2214 = vpop.f32.mrf.mxu0
      %v2215 = vadd.f32 %v2202, %v2214
      %v2216 = vpop.f32.mrf.mxu0
      %2217 = vdwg.mxu0
      %2218 = vmatpush.bf16.msra.mxu0 %v2095
      %2219 = vmatpush.bf16.msra.mxu0 %v2092
      %2220 = vmatpush.bf16.msra.mxu0 %v2089
      %2221 = vmatpush.bf16.msra.mxu0 %v2086
      %2222 = vmatpush.bf16.msra.mxu0 %v2083
      %2223 = vmatpush.bf16.msra.mxu0 %v2080
      %2224 = vmatpush.bf16.msra.mxu0 %v2077
      %2225 = vmatpush.bf16.msra.mxu0 %v2074
      %2226 = vmatmul.bf16.gmra.mxu0 %v1919
      %v2227 = vpop.f32.mrf.mxu0
      %v2228 = vadd.f32 0.0, %v2227
      %v2229 = vpop.f32.mrf.mxu0
      %2230 = vdwg.mxu0
      %2231 = vmatpush.bf16.msra.mxu0 0
      %2232 = vmatpush.bf16.msra.mxu0 %v2116
      %2233 = vmatpush.bf16.msra.mxu0 %v2113
      %2234 = vmatpush.bf16.msra.mxu0 %v2110
      %2235 = vmatpush.bf16.msra.mxu0 %v2107
      %2236 = vmatpush.bf16.msra.mxu0 %v2104
      %2237 = vmatpush.bf16.msra.mxu0 %v2101
      %2238 = vmatpush.bf16.msra.mxu0 %v2098
      %2239 = vmatmul.bf16.gmra.mxu0 %v2164
      %v2240 = vpop.f32.mrf.mxu0
      %v2241 = vadd.f32 %v2228, %v2240
      %v2242 = vpop.f32.mrf.mxu0
      %2243 = vdwg.mxu0
      %v2244 = vadd.f32 %v1378, %v2189
      %v2245 = vadd.f32 %v1404, %v2215
      %v2246 = vadd.f32 %v1430, %v2241
      %2247 = vst [vmem:[%s217] sm:$0xff] %v2244
      %2248 = vst [vmem:[%s217 + $0x8] sm:$0xff] %v2245
      %2249 = vst [vmem:[%s217 + $0x10] sm:$0xff] %v2246
      %p2250 = scmp.lt.s32.totalorder %s15, 1
      %s2251 = scalar_select %p2250, %s15, 1
      %s2252 = smul.addr %s2251, 3
      %s2253 = smul.addr %s2252, 8
      %s2254 = scalar_lea.vmem %s4, %s2253
      // Predicated region
      $region37: #{a_call__.1} parent=35 // pred_check
        %p2255 = pneg %p127
      $region38: #{a_call__.1} parent=35 // pred_check_branch
        %2257 = sbr.rel (%p2255) target = $region40
      $region39: #{a_call__.1} parent=35 // pred_region
        _
      $region40: #{a_call__.1} parent=35 // pred_fallthru
        _
    $region36: #{a_call__.1} parent=5 // pred_fallthru
      _
    %p2258 = scmp.le.s32.totalorder 2, %s10
    // Predicated region
    $region41: #{a_call__.1} parent=5 // pred_check
      %p2259 = pneg %p2258
    $region42: #{a_call__.1} parent=5 // pred_check_branch
      %2261 = sbr.rel (%p2259) target = $region44
    $region43: #{a_call__.1} parent=5 // pred_region
      %s2262 = ssub.s32 %s10, 2
      // Predicated region
      $region45: #{a_call__.1} parent=43 // pred_check
        %p2263 = pneg %p133
      $region46: #{a_call__.1} parent=43 // pred_check_branch
        %2265 = sbr.rel (%p2263) target = $region48
      $region47: #{a_call__.1} parent=43 // pred_region
        %p2266 = scmp.lt.s32.totalorder %s16, 1
        %s2267 = scalar_select %p2266, %s16, 1
        %s2268 = smul.addr %s2267, 3
        %s2269 = smul.addr %s2268, 8
        %s2270 = scalar_lea.vmem %s4, %s2269
      $region48: #{a_call__.1} parent=43 // pred_fallthru
        _
    $region44: #{a_call__.1} parent=5 // pred_fallthru
      _
  $region6: #{a_call__.1} parent=0 // loop_footer
    %s14 = sadd.s32 1, %s10
  $region7: #{a_call__.1} parent=0 // loop_footer_branch
    %9 = sbr.rel target = $region3
  $region8: #{a_call__.1} parent=0 // loop_exit
    _

</llo_original>
